<compile_context>
chip_gen: v7x
topology: tpu7x:2x2x1
jax: 0.10.0
libtpu: 0.0.40
codegen_flags: <defaults>
</compile_context>

<pallas_src>
import functools

import jax
import jax.numpy as jnp
from jax import lax
from jax.experimental import pallas as pl
from jax.experimental.pallas import tpu as pltpu


def _apply_activation(x, activation):
    """Activation applied in f32 inside the kernel."""
    if activation == "mish":
        # mish(x) = x * tanh(softplus(x)) = x * ((1+e^x)^2 - 1) / ((1+e^x)^2 + 1)
        # -> one exp instead of exp + log1p + tanh (EUP relief on v5e/v6e).
        xs = jnp.minimum(x, 20.0)
        t = 1.0 + jnp.exp(xs)
        t2 = t * t
        y = x * (t2 - 1.0) / (t2 + 1.0)
        return jnp.where(x > 20.0, x, y)
    elif activation == "relu":
        return jnp.maximum(x, 0.0)
    elif activation == "leaky":
        return jnp.where(x >= 0.0, x, 0.1 * x)
    elif activation == "linear":
        return x
    raise ValueError(f"unknown activation {activation!r}")


def conv_bn_act_kernel(x_ref, w_ref, scale_ref, bias_ref, o_ref, acc_ref, *,
                       kh, kw, stride, th, wo, activation):
    """One (batch, H-tile, Cout-tile) per grid step.

    x_ref:     (1, 1, TH_in, Wp, Cin)   halo'd input rows (compute dtype, VMEM)
    w_ref:     (KH, KW, Cin, TCO)       weight tile (compute dtype)
    scale_ref: (1, TCO)                 folded BN scale  (f32)
    bias_ref:  (1, TCO)                 folded BN bias   (f32)
    o_ref:     (1, TH, Wo, TCO)         output tile
    acc_ref:   (TH, Wo, TCO) f32        VMEM scratch accumulator
    """
    x = x_ref[0, 0]                               # (TH_in, Wp, Cin)
    cin = x.shape[-1]

    # Conv as KH*KW shifted matmuls accumulated in a VMEM f32 scratch.
    first = True
    for i in range(kh):
        for j in range(kw):
            if stride == 1:
                patch = x[i:i + th, j:j + wo, :]
            else:
                patch = lax.slice(
                    x,
                    (i, j, 0),
                    (i + stride * (th - 1) + 1, j + stride * (wo - 1) + 1, cin),
                    (stride, stride, 1))
            contrib = lax.dot_general(
                patch, w_ref[i, j],
                dimension_numbers=(((2,), (0,)), ((), ())),
                preferred_element_type=jnp.float32)
            if first:
                acc_ref[...] = contrib
                first = False
            else:
                acc_ref[...] += contrib

    # Folded BN + activation in f32, then cast to the output dtype.
    y = acc_ref[...] * scale_ref[0] + bias_ref[0]
    y = _apply_activation(y, activation)
    o_ref[0] = y.astype(o_ref.dtype)


def conv_bn_activation(x_nchw, w_oihw, bn_scale, bn_bias, *, stride, activation,
                       compute_dtype=jnp.bfloat16, block_h=8, block_cout=256):
    """Wrapper: NCHW in, NCHW out (PyTorch convention)."""
    N, Cin, H, W = x_nchw.shape
    Cout, Cin_w, KH, KW = w_oihw.shape
    assert Cin == Cin_w
    assert KH == KW and KH % 2 == 1, "pad=(k-1)//2 matches PyTorch only for odd kernels"
    pad = (KH - 1) // 2
    out_dtype = x_nchw.dtype

    Ho = (H + 2 * pad - KH) // stride + 1
    Wo = (W + 2 * pad - KW) // stride + 1
    Wp = W + 2 * pad

    # ---- tiling choices -----------------------------------------------------
    th = min(block_h, Ho)                         # output rows per tile
    n_h = -(-Ho // th)                            # cdiv
    ho_pad = n_h * th
    th_in = (th - 1) * stride + KH                # input rows per tile (with halo)

    if Cout <= block_cout or Cout % block_cout != 0:
        tco = Cout
    else:
        tco = block_cout
    n_co = Cout // tco

    # ---- layout glue (NCHW -> NHWC, pad, halo row tiles) ----------------------
    x = jnp.transpose(x_nchw, (0, 2, 3, 1))                       # NHWC
    hp_need = (ho_pad - 1) * stride + KH
    pad_bot = max(hp_need - (H + 2 * pad), 0)
    x = jnp.pad(x, ((0, 0), (pad, pad + pad_bot), (pad, pad), (0, 0)))

    starts = jnp.arange(n_h, dtype=jnp.int32) * (th * stride)
    row_idx = starts[:, None] + jnp.arange(th_in, dtype=jnp.int32)[None, :]
    x_tiles = x[:, row_idx].astype(compute_dtype)                 # (N, n_h, th_in, Wp, Cin)

    w = jnp.transpose(w_oihw, (2, 3, 1, 0)).astype(compute_dtype)  # (KH, KW, Cin, Cout)
    scale = bn_scale.reshape(1, Cout).astype(jnp.float32)
    bias = bn_bias.reshape(1, Cout).astype(jnp.float32)

    kernel = functools.partial(
        conv_bn_act_kernel, kh=KH, kw=KW, stride=stride,
        th=th, wo=Wo, activation=activation)

    itm_c = jnp.dtype(compute_dtype).itemsize
    itm_o = jnp.dtype(out_dtype).itemsize
    flops = 2 * N * ho_pad * Wo * Cout * Cin * KH * KW
    transc = N * ho_pad * Wo * Cout if activation == "mish" else 0
    bytes_accessed = (N * n_h * th_in * Wp * Cin * itm_c
                      + KH * KW * Cin * Cout * itm_c
                      + N * ho_pad * Wo * Cout * itm_o)

    out_nhwc = pl.pallas_call(
        kernel,
        out_shape=jax.ShapeDtypeStruct((N, ho_pad, Wo, Cout), out_dtype),
        grid_spec=pltpu.PrefetchScalarGridSpec(
            num_scalar_prefetch=0,
            grid=(N, n_h, n_co),
            in_specs=[
                pl.BlockSpec((1, 1, th_in, Wp, Cin), lambda n, h, c: (n, h, 0, 0, 0)),
                pl.BlockSpec((KH, KW, Cin, tco), lambda n, h, c: (0, 0, 0, c)),
                pl.BlockSpec((1, tco), lambda n, h, c: (0, c)),
                pl.BlockSpec((1, tco), lambda n, h, c: (0, c)),
            ],
            out_specs=pl.BlockSpec((1, th, Wo, tco), lambda n, h, c: (n, h, 0, c)),
            scratch_shapes=[pltpu.VMEM((th, Wo, tco), jnp.float32)],
        ),
        compiler_params=pltpu.CompilerParams(
            dimension_semantics=("parallel", "parallel", "parallel"),
            vmem_limit_bytes=48 * 1024 * 1024),
        cost_estimate=pl.CostEstimate(
            flops=flops, transcendentals=transc, bytes_accessed=bytes_accessed),
    )(x_tiles, w, scale, bias)

    out_nhwc = out_nhwc[:, :Ho]                                   # drop padded rows
    return jnp.transpose(out_nhwc, (0, 3, 1, 2))                  # back to NCHW


def _reference(x_nchw, w_oihw, bn_scale, bn_bias, *, stride, activation):
    KH = w_oihw.shape[2]
    pad = (KH - 1) // 2
    y = lax.conv_general_dilated(
        x_nchw.astype(jnp.float32), w_oihw.astype(jnp.float32),
        window_strides=(stride, stride),
        padding=[(pad, pad), (pad, pad)],
        dimension_numbers=("NCHW", "OIHW", "NCHW"))
    y = y * bn_scale[None, :, None, None] + bn_bias[None, :, None, None]
    if activation == "mish":
        sp = jnp.where(y > 20.0, y, jnp.log1p(jnp.exp(jnp.minimum(y, 20.0))))
        y = y * jnp.tanh(sp)
    elif activation == "relu":
        y = jnp.maximum(y, 0.0)
    elif activation == "leaky":
        y = jnp.where(y >= 0.0, y, 0.1 * y)
    return y


if __name__ == "__main__":
    key = jax.random.PRNGKey(0)
    k_x, k_w, k_g, k_b, k_m, k_v = jax.random.split(key, 6)

    # Small shapes consistent with the module: Conv_Bn_Activation(4, 8, 3, ...)
    N, Cin, H, W = 2, 4, 16, 16
    Cout, K = 8, 3

    x = jax.random.normal(k_x, (N, Cin, H, W), dtype=jnp.float32)
    w = jax.random.normal(k_w, (Cout, Cin, K, K), dtype=jnp.float32) * 0.1

    # Deterministic BatchNorm parameters (eval-mode running stats), eps = 1e-5.
    gamma = jax.random.uniform(k_g, (Cout,), minval=0.5, maxval=1.5)
    beta = jax.random.normal(k_b, (Cout,)) * 0.1
    running_mean = jax.random.normal(k_m, (Cout,)) * 0.1
    running_var = jax.random.uniform(k_v, (Cout,), minval=0.5, maxval=1.5)
    eps = 1e-5
    bn_scale = gamma / jnp.sqrt(running_var + eps)
    bn_bias = beta - running_mean * bn_scale

    # 1) exact f32 compute path, stride 1, mish (tight tolerance vs f32 reference)
    out = conv_bn_activation(x, w, bn_scale, bn_bias, stride=1, activation="mish",
                             compute_dtype=jnp.float32)
    out = jax.block_until_ready(out)
    ref = _reference(x, w, bn_scale, bn_bias, stride=1, activation="mish")
    assert out.shape == (N, Cout, H, W)
    assert jnp.allclose(out, ref, atol=1e-4, rtol=1e-4), (
        float(jnp.max(jnp.abs(out - ref))))

    # 2) bf16 compute path (MXU-native), compared against a bf16-quantized f32 reference
    out_bf = conv_bn_activation(x, w, bn_scale, bn_bias, stride=1, activation="mish",
                                compute_dtype=jnp.bfloat16)
    out_bf = jax.block_until_ready(out_bf)
    x_q = x.astype(jnp.bfloat16).astype(jnp.float32)
    w_q = w.astype(jnp.bfloat16).astype(jnp.float32)
    ref_bf = _reference(x_q, w_q, bn_scale, bn_bias, stride=1, activation="mish")
    assert jnp.allclose(out_bf, ref_bf, atol=5e-3, rtol=5e-3), (
        float(jnp.max(jnp.abs(out_bf - ref_bf))))

    # 3) strided conv + leaky activation
    out_s2 = conv_bn_activation(x, w, bn_scale, bn_bias, stride=2, activation="leaky",
                                compute_dtype=jnp.float32)
    out_s2 = jax.block_until_ready(out_s2)
    ref_s2 = _reference(x, w, bn_scale, bn_bias, stride=2, activation="leaky")
    assert out_s2.shape == (N, Cout, H // 2, W // 2)
    assert jnp.allclose(out_s2, ref_s2, atol=1e-4, rtol=1e-4), (
        float(jnp.max(jnp.abs(out_s2 - ref_s2))))

    print("KERNEL_OK")
</pallas_src>

<mosaic_0001>
module attributes {stable_mosaic.version = 11 : i64} {
  func.func @conv_bn_act_kernel(%arg0: i32, %arg1: i32, %arg2: i32, %arg3: memref<1x1x10x18x4xf32, #tpu.memory_space<vmem>>, %arg4: memref<3x3x4x8xf32, #tpu.memory_space<vmem>>, %arg5: memref<1x8xf32, #tpu.memory_space<vmem>>, %arg6: memref<1x8xf32, #tpu.memory_space<vmem>>, %arg7: memref<1x8x16x8xf32, #tpu.memory_space<vmem>>, %arg8: memref<8x16x8xf32, #tpu.memory_space<vmem>>) attributes {dimension_semantics = [#tpu.dimension_semantics<parallel>, #tpu.dimension_semantics<parallel>, #tpu.dimension_semantics<parallel>], iteration_bounds = array<i64: 2, 2, 1>, scalar_prefetch = 0 : i64, scratch_operands = 1 : i64, tpu.core_type = #tpu.core_type<tc>, window_params = [{transform_indices = @transform_0, window_bounds = array<i64: 1, 1, 10, 18, 4>}, {transform_indices = @transform_1, window_bounds = array<i64: 3, 3, 4, 8>}, {transform_indices = @transform_2, window_bounds = array<i64: 1, 8>}, {transform_indices = @transform_3, window_bounds = array<i64: 1, 8>}, {transform_indices = @transform_4, window_bounds = array<i64: 1, 8, 16, 8>}]} {
    %c0 = arith.constant 0 : index
    %c0_0 = arith.constant 0 : index
    %c0_1 = arith.constant 0 : index
    %c0_2 = arith.constant 0 : index
    %c0_3 = arith.constant 0 : index
    %0 = vector.load %arg3[%c0, %c0_0, %c0_1, %c0_2, %c0_3] : memref<1x1x10x18x4xf32, #tpu.memory_space<vmem>>, vector<1x1x10x18x4xf32>
    %1 = vector.shape_cast %0 : vector<1x1x10x18x4xf32> to vector<10x18x4xf32>
    %2 = vector.extract_strided_slice %1 {offsets = [0, 0, 0], sizes = [8, 16, 4], strides = [1, 1, 1]} : vector<10x18x4xf32> to vector<8x16x4xf32>
    %c0_4 = arith.constant 0 : index
    %c0_5 = arith.constant 0 : index
    %c0_6 = arith.constant 0 : index
    %c0_7 = arith.constant 0 : index
    %3 = vector.load %arg4[%c0_4, %c0_5, %c0_6, %c0_7] : memref<3x3x4x8xf32, #tpu.memory_space<vmem>>, vector<1x1x4x8xf32>
    %4 = vector.shape_cast %3 : vector<1x1x4x8xf32> to vector<4x8xf32>
    %cst = arith.constant dense<0.000000e+00> : vector<8x16x8xf32>
    %5 = tpu.matmul %2, %4, %cst {dimension_numbers = #tpu.dot_dimension_numbers<[2], [0], [0, 1], [1], [0, 0, 0, 1, 1, 1], [], []>} : vector<8x16x4xf32>, vector<4x8xf32>, vector<8x16x8xf32> -> vector<8x16x8xf32>
    %c0_8 = arith.constant 0 : index
    %c0_9 = arith.constant 0 : index
    %c0_10 = arith.constant 0 : index
    %6 = vector.load %arg8[%c0_8, %c0_9, %c0_10] : memref<8x16x8xf32, #tpu.memory_space<vmem>>, vector<8x16x8xf32>
    tpu.vector_store %arg8[%c0_8, %c0_9, %c0_10], %5 {strides = array<i32>} : memref<8x16x8xf32, #tpu.memory_space<vmem>>, vector<8x16x8xf32>,
    %7 = vector.extract_strided_slice %1 {offsets = [0, 1, 0], sizes = [8, 16, 4], strides = [1, 1, 1]} : vector<10x18x4xf32> to vector<8x16x4xf32>
    %c0_11 = arith.constant 0 : index
    %c1 = arith.constant 1 : index
    %c0_12 = arith.constant 0 : index
    %c0_13 = arith.constant 0 : index
    %8 = vector.load %arg4[%c0_11, %c1, %c0_12, %c0_13] : memref<3x3x4x8xf32, #tpu.memory_space<vmem>>, vector<1x1x4x8xf32>
    %9 = vector.shape_cast %8 : vector<1x1x4x8xf32> to vector<4x8xf32>
    %cst_14 = arith.constant dense<0.000000e+00> : vector<8x16x8xf32>
    %10 = tpu.matmul %7, %9, %cst_14 {dimension_numbers = #tpu.dot_dimension_numbers<[2], [0], [0, 1], [1], [0, 0, 0, 1, 1, 1], [], []>} : vector<8x16x4xf32>, vector<4x8xf32>, vector<8x16x8xf32> -> vector<8x16x8xf32>
    %c0_15 = arith.constant 0 : index
    %c0_16 = arith.constant 0 : index
    %c0_17 = arith.constant 0 : index
    %11 = vector.load %arg8[%c0_15, %c0_16, %c0_17] : memref<8x16x8xf32, #tpu.memory_space<vmem>>, vector<8x16x8xf32>
    %12 = arith.addf %11, %10 : vector<8x16x8xf32>
    %c0_18 = arith.constant 0 : index
    %c0_19 = arith.constant 0 : index
    %c0_20 = arith.constant 0 : index
    %13 = vector.load %arg8[%c0_18, %c0_19, %c0_20] : memref<8x16x8xf32, #tpu.memory_space<vmem>>, vector<8x16x8xf32>
    tpu.vector_store %arg8[%c0_18, %c0_19, %c0_20], %12 {strides = array<i32>} : memref<8x16x8xf32, #tpu.memory_space<vmem>>, vector<8x16x8xf32>,
    %14 = vector.extract_strided_slice %1 {offsets = [0, 2, 0], sizes = [8, 16, 4], strides = [1, 1, 1]} : vector<10x18x4xf32> to vector<8x16x4xf32>
    %c0_21 = arith.constant 0 : index
    %c2 = arith.constant 2 : index
    %c0_22 = arith.constant 0 : index
    %c0_23 = arith.constant 0 : index
    %15 = vector.load %arg4[%c0_21, %c2, %c0_22, %c0_23] : memref<3x3x4x8xf32, #tpu.memory_space<vmem>>, vector<1x1x4x8xf32>
    %16 = vector.shape_cast %15 : vector<1x1x4x8xf32> to vector<4x8xf32>
    %cst_24 = arith.constant dense<0.000000e+00> : vector<8x16x8xf32>
    %17 = tpu.matmul %14, %16, %cst_24 {dimension_numbers = #tpu.dot_dimension_numbers<[2], [0], [0, 1], [1], [0, 0, 0, 1, 1, 1], [], []>} : vector<8x16x4xf32>, vector<4x8xf32>, vector<8x16x8xf32> -> vector<8x16x8xf32>
    %c0_25 = arith.constant 0 : index
    %c0_26 = arith.constant 0 : index
    %c0_27 = arith.constant 0 : index
    %18 = vector.load %arg8[%c0_25, %c0_26, %c0_27] : memref<8x16x8xf32, #tpu.memory_space<vmem>>, vector<8x16x8xf32>
    %19 = arith.addf %18, %17 : vector<8x16x8xf32>
    %c0_28 = arith.constant 0 : index
    %c0_29 = arith.constant 0 : index
    %c0_30 = arith.constant 0 : index
    %20 = vector.load %arg8[%c0_28, %c0_29, %c0_30] : memref<8x16x8xf32, #tpu.memory_space<vmem>>, vector<8x16x8xf32>
    tpu.vector_store %arg8[%c0_28, %c0_29, %c0_30], %19 {strides = array<i32>} : memref<8x16x8xf32, #tpu.memory_space<vmem>>, vector<8x16x8xf32>,
    %21 = vector.extract_strided_slice %1 {offsets = [1, 0, 0], sizes = [8, 16, 4], strides = [1, 1, 1]} : vector<10x18x4xf32> to vector<8x16x4xf32>
    %c1_31 = arith.constant 1 : index
    %c0_32 = arith.constant 0 : index
    %c0_33 = arith.constant 0 : index
    %c0_34 = arith.constant 0 : index
    %22 = vector.load %arg4[%c1_31, %c0_32, %c0_33, %c0_34] : memref<3x3x4x8xf32, #tpu.memory_space<vmem>>, vector<1x1x4x8xf32>
    %23 = vector.shape_cast %22 : vector<1x1x4x8xf32> to vector<4x8xf32>
    %cst_35 = arith.constant dense<0.000000e+00> : vector<8x16x8xf32>
    %24 = tpu.matmul %21, %23, %cst_35 {dimension_numbers = #tpu.dot_dimension_numbers<[2], [0], [0, 1], [1], [0, 0, 0, 1, 1, 1], [], []>} : vector<8x16x4xf32>, vector<4x8xf32>, vector<8x16x8xf32> -> vector<8x16x8xf32>
    %c0_36 = arith.constant 0 : index
    %c0_37 = arith.constant 0 : index
    %c0_38 = arith.constant 0 : index
    %25 = vector.load %arg8[%c0_36, %c0_37, %c0_38] : memref<8x16x8xf32, #tpu.memory_space<vmem>>, vector<8x16x8xf32>
    %26 = arith.addf %25, %24 : vector<8x16x8xf32>
    %c0_39 = arith.constant 0 : index
    %c0_40 = arith.constant 0 : index
    %c0_41 = arith.constant 0 : index
    %27 = vector.load %arg8[%c0_39, %c0_40, %c0_41] : memref<8x16x8xf32, #tpu.memory_space<vmem>>, vector<8x16x8xf32>
    tpu.vector_store %arg8[%c0_39, %c0_40, %c0_41], %26 {strides = array<i32>} : memref<8x16x8xf32, #tpu.memory_space<vmem>>, vector<8x16x8xf32>,
    %28 = vector.extract_strided_slice %1 {offsets = [1, 1, 0], sizes = [8, 16, 4], strides = [1, 1, 1]} : vector<10x18x4xf32> to vector<8x16x4xf32>
    %c1_42 = arith.constant 1 : index
    %c1_43 = arith.constant 1 : index
    %c0_44 = arith.constant 0 : index
    %c0_45 = arith.constant 0 : index
    %29 = vector.load %arg4[%c1_42, %c1_43, %c0_44, %c0_45] : memref<3x3x4x8xf32, #tpu.memory_space<vmem>>, vector<1x1x4x8xf32>
    %30 = vector.shape_cast %29 : vector<1x1x4x8xf32> to vector<4x8xf32>
    %cst_46 = arith.constant dense<0.000000e+00> : vector<8x16x8xf32>
    %31 = tpu.matmul %28, %30, %cst_46 {dimension_numbers = #tpu.dot_dimension_numbers<[2], [0], [0, 1], [1], [0, 0, 0, 1, 1, 1], [], []>} : vector<8x16x4xf32>, vector<4x8xf32>, vector<8x16x8xf32> -> vector<8x16x8xf32>
    %c0_47 = arith.constant 0 : index
    %c0_48 = arith.constant 0 : index
    %c0_49 = arith.constant 0 : index
    %32 = vector.load %arg8[%c0_47, %c0_48, %c0_49] : memref<8x16x8xf32, #tpu.memory_space<vmem>>, vector<8x16x8xf32>
    %33 = arith.addf %32, %31 : vector<8x16x8xf32>
    %c0_50 = arith.constant 0 : index
    %c0_51 = arith.constant 0 : index
    %c0_52 = arith.constant 0 : index
    %34 = vector.load %arg8[%c0_50, %c0_51, %c0_52] : memref<8x16x8xf32, #tpu.memory_space<vmem>>, vector<8x16x8xf32>
    tpu.vector_store %arg8[%c0_50, %c0_51, %c0_52], %33 {strides = array<i32>} : memref<8x16x8xf32, #tpu.memory_space<vmem>>, vector<8x16x8xf32>,
    %35 = vector.extract_strided_slice %1 {offsets = [1, 2, 0], sizes = [8, 16, 4], strides = [1, 1, 1]} : vector<10x18x4xf32> to vector<8x16x4xf32>
    %c1_53 = arith.constant 1 : index
    %c2_54 = arith.constant 2 : index
    %c0_55 = arith.constant 0 : index
    %c0_56 = arith.constant 0 : index
    %36 = vector.load %arg4[%c1_53, %c2_54, %c0_55, %c0_56] : memref<3x3x4x8xf32, #tpu.memory_space<vmem>>, vector<1x1x4x8xf32>
    %37 = vector.shape_cast %36 : vector<1x1x4x8xf32> to vector<4x8xf32>
    %cst_57 = arith.constant dense<0.000000e+00> : vector<8x16x8xf32>
    %38 = tpu.matmul %35, %37, %cst_57 {dimension_numbers = #tpu.dot_dimension_numbers<[2], [0], [0, 1], [1], [0, 0, 0, 1, 1, 1], [], []>} : vector<8x16x4xf32>, vector<4x8xf32>, vector<8x16x8xf32> -> vector<8x16x8xf32>
    %c0_58 = arith.constant 0 : index
    %c0_59 = arith.constant 0 : index
    %c0_60 = arith.constant 0 : index
    %39 = vector.load %arg8[%c0_58, %c0_59, %c0_60] : memref<8x16x8xf32, #tpu.memory_space<vmem>>, vector<8x16x8xf32>
    %40 = arith.addf %39, %38 : vector<8x16x8xf32>
    %c0_61 = arith.constant 0 : index
    %c0_62 = arith.constant 0 : index
    %c0_63 = arith.constant 0 : index
    %41 = vector.load %arg8[%c0_61, %c0_62, %c0_63] : memref<8x16x8xf32, #tpu.memory_space<vmem>>, vector<8x16x8xf32>
    tpu.vector_store %arg8[%c0_61, %c0_62, %c0_63], %40 {strides = array<i32>} : memref<8x16x8xf32, #tpu.memory_space<vmem>>, vector<8x16x8xf32>,
    %42 = vector.extract_strided_slice %1 {offsets = [2, 0, 0], sizes = [8, 16, 4], strides = [1, 1, 1]} : vector<10x18x4xf32> to vector<8x16x4xf32>
    %c2_64 = arith.constant 2 : index
    %c0_65 = arith.constant 0 : index
    %c0_66 = arith.constant 0 : index
    %c0_67 = arith.constant 0 : index
    %43 = vector.load %arg4[%c2_64, %c0_65, %c0_66, %c0_67] : memref<3x3x4x8xf32, #tpu.memory_space<vmem>>, vector<1x1x4x8xf32>
    %44 = vector.shape_cast %43 : vector<1x1x4x8xf32> to vector<4x8xf32>
    %cst_68 = arith.constant dense<0.000000e+00> : vector<8x16x8xf32>
    %45 = tpu.matmul %42, %44, %cst_68 {dimension_numbers = #tpu.dot_dimension_numbers<[2], [0], [0, 1], [1], [0, 0, 0, 1, 1, 1], [], []>} : vector<8x16x4xf32>, vector<4x8xf32>, vector<8x16x8xf32> -> vector<8x16x8xf32>
    %c0_69 = arith.constant 0 : index
    %c0_70 = arith.constant 0 : index
    %c0_71 = arith.constant 0 : index
    %46 = vector.load %arg8[%c0_69, %c0_70, %c0_71] : memref<8x16x8xf32, #tpu.memory_space<vmem>>, vector<8x16x8xf32>
    %47 = arith.addf %46, %45 : vector<8x16x8xf32>
    %c0_72 = arith.constant 0 : index
    %c0_73 = arith.constant 0 : index
    %c0_74 = arith.constant 0 : index
    %48 = vector.load %arg8[%c0_72, %c0_73, %c0_74] : memref<8x16x8xf32, #tpu.memory_space<vmem>>, vector<8x16x8xf32>
    tpu.vector_store %arg8[%c0_72, %c0_73, %c0_74], %47 {strides = array<i32>} : memref<8x16x8xf32, #tpu.memory_space<vmem>>, vector<8x16x8xf32>,
    %49 = vector.extract_strided_slice %1 {offsets = [2, 1, 0], sizes = [8, 16, 4], strides = [1, 1, 1]} : vector<10x18x4xf32> to vector<8x16x4xf32>
    %c2_75 = arith.constant 2 : index
    %c1_76 = arith.constant 1 : index
    %c0_77 = arith.constant 0 : index
    %c0_78 = arith.constant 0 : index
    %50 = vector.load %arg4[%c2_75, %c1_76, %c0_77, %c0_78] : memref<3x3x4x8xf32, #tpu.memory_space<vmem>>, vector<1x1x4x8xf32>
    %51 = vector.shape_cast %50 : vector<1x1x4x8xf32> to vector<4x8xf32>
    %cst_79 = arith.constant dense<0.000000e+00> : vector<8x16x8xf32>
    %52 = tpu.matmul %49, %51, %cst_79 {dimension_numbers = #tpu.dot_dimension_numbers<[2], [0], [0, 1], [1], [0, 0, 0, 1, 1, 1], [], []>} : vector<8x16x4xf32>, vector<4x8xf32>, vector<8x16x8xf32> -> vector<8x16x8xf32>
    %c0_80 = arith.constant 0 : index
    %c0_81 = arith.constant 0 : index
    %c0_82 = arith.constant 0 : index
    %53 = vector.load %arg8[%c0_80, %c0_81, %c0_82] : memref<8x16x8xf32, #tpu.memory_space<vmem>>, vector<8x16x8xf32>
    %54 = arith.addf %53, %52 : vector<8x16x8xf32>
    %c0_83 = arith.constant 0 : index
    %c0_84 = arith.constant 0 : index
    %c0_85 = arith.constant 0 : index
    %55 = vector.load %arg8[%c0_83, %c0_84, %c0_85] : memref<8x16x8xf32, #tpu.memory_space<vmem>>, vector<8x16x8xf32>
    tpu.vector_store %arg8[%c0_83, %c0_84, %c0_85], %54 {strides = array<i32>} : memref<8x16x8xf32, #tpu.memory_space<vmem>>, vector<8x16x8xf32>,
    %56 = vector.extract_strided_slice %1 {offsets = [2, 2, 0], sizes = [8, 16, 4], strides = [1, 1, 1]} : vector<10x18x4xf32> to vector<8x16x4xf32>
    %c2_86 = arith.constant 2 : index
    %c2_87 = arith.constant 2 : index
    %c0_88 = arith.constant 0 : index
    %c0_89 = arith.constant 0 : index
    %57 = vector.load %arg4[%c2_86, %c2_87, %c0_88, %c0_89] : memref<3x3x4x8xf32, #tpu.memory_space<vmem>>, vector<1x1x4x8xf32>
    %58 = vector.shape_cast %57 : vector<1x1x4x8xf32> to vector<4x8xf32>
    %cst_90 = arith.constant dense<0.000000e+00> : vector<8x16x8xf32>
    %59 = tpu.matmul %56, %58, %cst_90 {dimension_numbers = #tpu.dot_dimension_numbers<[2], [0], [0, 1], [1], [0, 0, 0, 1, 1, 1], [], []>} : vector<8x16x4xf32>, vector<4x8xf32>, vector<8x16x8xf32> -> vector<8x16x8xf32>
    %c0_91 = arith.constant 0 : index
    %c0_92 = arith.constant 0 : index
    %c0_93 = arith.constant 0 : index
    %60 = vector.load %arg8[%c0_91, %c0_92, %c0_93] : memref<8x16x8xf32, #tpu.memory_space<vmem>>, vector<8x16x8xf32>
    %61 = arith.addf %60, %59 : vector<8x16x8xf32>
    %c0_94 = arith.constant 0 : index
    %c0_95 = arith.constant 0 : index
    %c0_96 = arith.constant 0 : index
    %62 = vector.load %arg8[%c0_94, %c0_95, %c0_96] : memref<8x16x8xf32, #tpu.memory_space<vmem>>, vector<8x16x8xf32>
    tpu.vector_store %arg8[%c0_94, %c0_95, %c0_96], %61 {strides = array<i32>} : memref<8x16x8xf32, #tpu.memory_space<vmem>>, vector<8x16x8xf32>,
    %c0_97 = arith.constant 0 : index
    %c0_98 = arith.constant 0 : index
    %c0_99 = arith.constant 0 : index
    %63 = vector.load %arg8[%c0_97, %c0_98, %c0_99] : memref<8x16x8xf32, #tpu.memory_space<vmem>>, vector<8x16x8xf32>
    %c0_100 = arith.constant 0 : index
    %c0_101 = arith.constant 0 : index
    %64 = vector.load %arg5[%c0_100, %c0_101] : memref<1x8xf32, #tpu.memory_space<vmem>>, vector<1x8xf32>
    %65 = vector.shape_cast %64 : vector<1x8xf32> to vector<8xf32>
    %66 = vector.shape_cast %65 : vector<8xf32> to vector<1x1x8xf32>
    %67 = vector.broadcast %66 : vector<1x1x8xf32> to vector<8x16x8xf32>
    %68 = arith.mulf %63, %67 : vector<8x16x8xf32>
    %c0_102 = arith.constant 0 : index
    %c0_103 = arith.constant 0 : index
    %69 = vector.load %arg6[%c0_102, %c0_103] : memref<1x8xf32, #tpu.memory_space<vmem>>, vector<1x8xf32>
    %70 = vector.shape_cast %69 : vector<1x8xf32> to vector<8xf32>
    %71 = vector.shape_cast %70 : vector<8xf32> to vector<1x1x8xf32>
    %72 = vector.broadcast %71 : vector<1x1x8xf32> to vector<8x16x8xf32>
    %73 = arith.addf %68, %72 : vector<8x16x8xf32>
    %cst_104 = arith.constant 2.000000e+01 : f32
    %74 = vector.broadcast %cst_104 : f32 to vector<8x16x8xf32>
    %75 = arith.minimumf %73, %74 : vector<8x16x8xf32>
    %76 = math.exp %75 : vector<8x16x8xf32>
    %cst_105 = arith.constant 1.000000e+00 : f32
    %77 = vector.broadcast %cst_105 : f32 to vector<8x16x8xf32>
    %78 = arith.addf %77, %76 : vector<8x16x8xf32>
    %79 = arith.mulf %78, %78 : vector<8x16x8xf32>
    %cst_106 = arith.constant 1.000000e+00 : f32
    %80 = vector.broadcast %cst_106 : f32 to vector<8x16x8xf32>
    %81 = arith.subf %79, %80 : vector<8x16x8xf32>
    %82 = arith.mulf %73, %81 : vector<8x16x8xf32>
    %cst_107 = arith.constant 1.000000e+00 : f32
    %83 = vector.broadcast %cst_107 : f32 to vector<8x16x8xf32>
    %84 = arith.addf %79, %83 : vector<8x16x8xf32>
    %85 = arith.divf %82, %84 : vector<8x16x8xf32>
    %cst_108 = arith.constant 2.000000e+01 : f32
    %86 = vector.broadcast %cst_108 : f32 to vector<8x16x8xf32>
    %87 = arith.cmpf ogt, %73, %86 : vector<8x16x8xf32>
    %88 = arith.select %87, %73, %85 : vector<8x16x8xi1>, vector<8x16x8xf32>
    %c0_109 = arith.constant 0 : index
    %c0_110 = arith.constant 0 : index
    %c0_111 = arith.constant 0 : index
    %c0_112 = arith.constant 0 : index
    %89 = vector.load %arg7[%c0_109, %c0_110, %c0_111, %c0_112] : memref<1x8x16x8xf32, #tpu.memory_space<vmem>>, vector<1x8x16x8xf32>
    %90 = vector.shape_cast %89 : vector<1x8x16x8xf32> to vector<8x16x8xf32>
    %91 = vector.shape_cast %88 : vector<8x16x8xf32> to vector<1x8x16x8xf32>
    tpu.vector_store %arg7[%c0_109, %c0_110, %c0_111, %c0_112], %91 {strides = array<i32>} : memref<1x8x16x8xf32, #tpu.memory_space<vmem>>, vector<1x8x16x8xf32>,
    return
  }
  func.func @transform_0(%arg0: i32, %arg1: i32, %arg2: i32) -> (i32, i32, i32, i32, i32) {
    %c0_i32 = arith.constant 0 : i32
    %c0_i32_0 = arith.constant 0 : i32
    %c0_i32_1 = arith.constant 0 : i32
    %c0_i32_2 = arith.constant 0 : i32
    return %arg0, %arg1, %c0_i32, %c0_i32_0, %c0_i32_1 : i32, i32, i32, i32, i32
  }
  func.func @transform_1(%arg0: i32, %arg1: i32, %arg2: i32) -> (i32, i32, i32, i32) {
    %c0_i32 = arith.constant 0 : i32
    %c0_i32_0 = arith.constant 0 : i32
    %c0_i32_1 = arith.constant 0 : i32
    %c0_i32_2 = arith.constant 0 : i32
    return %c0_i32, %c0_i32_0, %c0_i32_1, %arg2 : i32, i32, i32, i32
  }
  func.func @transform_2(%arg0: i32, %arg1: i32, %arg2: i32) -> (i32, i32) {
    %c0_i32 = arith.constant 0 : i32
    %c0_i32_0 = arith.constant 0 : i32
    return %c0_i32, %arg2 : i32, i32
  }
  func.func @transform_3(%arg0: i32, %arg1: i32, %arg2: i32) -> (i32, i32) {
    %c0_i32 = arith.constant 0 : i32
    %c0_i32_0 = arith.constant 0 : i32
    return %c0_i32, %arg2 : i32, i32
  }
  func.func @transform_4(%arg0: i32, %arg1: i32, %arg2: i32) -> (i32, i32, i32, i32) {
    %c0_i32 = arith.constant 0 : i32
    %c0_i32_0 = arith.constant 0 : i32
    return %arg0, %arg1, %c0_i32, %arg2 : i32, i32, i32, i32
  }
}

</mosaic_0001>

<llo_original>
// kernel: tpu_custom_call.1
$region0: #{tpu_custom_call.1}
  #allocation0 [shape = 'u32[]', space=smem, size = 0x4, offset = 0x4, fixed_abs, tag = 'smem constant byte address 0x4 - core index']
  #allocation1 [shape = 'u32[144,128]{1,0:T(1,128)}', space=vmem, size = 0x12000, scoped, tag = 'internal scratch']
  #allocation2 [shape = 'f32[8,16,8]{2,1,0:T(8,128)}', space=vmem, size = 0x10000, scoped, tag = 'scratch operand']
  %s0 = inlined_call_operand.vmem [shape: f32[2,2,10,18,4], index: 0, kind: input, shape index: {}]
  %s1 = inlined_call_operand.vmem [shape: f32[3,3,4,8], index: 1, kind: input, shape index: {}]
  %s2 = inlined_call_operand.vmem [shape: f32[1,8], index: 2, kind: input, shape index: {}]
  %s3 = inlined_call_operand.vmem [shape: f32[1,8], index: 3, kind: input, shape index: {}]
  %s4 = inlined_call_operand.vmem [shape: f32[2,16,16,8], index: 4, kind: output, shape index: {}]
  %s5 = sld [smem:[#allocation0]]
  $region49: #{tpu_custom_call.1} parent=0
    _
  %s7 = ssub.s32 1, %s5
  %s8 = scalar_select 0, %s7, %s5
  loop: start=0, step=1, limit=6
  $region2: #{tpu_custom_call.1} parent=0 // loop_pre_header
    _
  $region3: #{tpu_custom_call.1} parent=0 // loop_header
    %s10 = sphi 0, %s14
    %p11 = scmp.ge.s32.totalorder %s10, 6
    %s17 = sphi 0, %s36
    %s18 = sphi 0, %s32
    %s19 = sphi 0, %s28
    %s20 = sphi 0, %s17
    %s21 = sphi 0, %s18
    %s22 = sphi 0, %s19
    %s23 = sphi 0, %s20
    %s24 = sphi 0, %s21
    %s25 = sphi 0, %s22
    %s41 = sphi 0, %s43
    %s44 = sphi 0, %s41
    %s45 = sphi 0, %s44
    %s61 = sphi 0, %s45
    %s67 = sphi 0, %s69
    %s70 = sphi 0, %s67
    %s71 = sphi 0, %s70
    %s87 = sphi 0, %s71
    %s93 = sphi 0, %s95
    %s96 = sphi 0, %s93
    %s97 = sphi 0, %s96
    %s113 = sphi 0, %s97
    %s119 = sphi 0, %s121
    %s122 = sphi 0, %s119
    %s123 = sphi 0, %s122
    %s139 = sphi 0, %s123
    %s149 = sphi 0, %s151
    %s152 = sphi 0, %s149
    %s153 = sphi 0, %s152
    %s169 = sphi 0, %s153
  $region4: #{tpu_custom_call.1} parent=0 // loop_header_branch
    %13 = sbr.rel (%p11) target = $region8
  $region5: #{tpu_custom_call.1} parent=0 // loop_body
    %s15 = ssub.s32 %s10, 1
    %s16 = ssub.s32 %s10, 2
    %s26 = sadd.s32 1, %s19
    %p27 = scmp.ge.s32.totalorder %s26, 1
    %s28 = scalar_select %p27, 0, %s26
    %s29 = sadd.s32 1, %s18
    %s30 = scalar_select %p27, %s29, %s18
    %p31 = scmp.ge.s32.totalorder %s30, 2
    %s32 = scalar_select %p31, 0, %s30
    %s33 = sadd.s32 1, %s17
    %s34 = scalar_select %p31, %s33, %s17
    %p35 = scmp.ge.s32.totalorder %s34, 2
    %s36 = scalar_select %p35, 0, %s34
    %s37 = ssub.s32 %s17, %s36
    %s38 = ssub.s32 %s18, %s32
    %s39 = sor.u32 %s37, %s38
    %p40 = scmp.eq.s32.totalorder %s39, 0
    %s42 = sadd.s32 %s41, 1
    %s43 = scalar_select %p40, %s41, %s42
    %p46 = pneg %p40
    %p47 = scmp.eq.s32.totalorder %s10, 3
    %p48 = por %p46, %p47
    %p49 = scmp.ne.s32.totalorder %s41, %s44
    %p50 = scmp.eq.s32.totalorder %s10, 0
    %p51 = por %p49, %p50
    %p52 = scmp.ne.s32.totalorder %s41, %s44
    %p53 = scmp.eq.s32.totalorder %s15, 3
    %p54 = por %p52, %p53
    %p55 = scmp.ne.s32.totalorder %s44, %s45
    %p56 = scmp.eq.s32.totalorder %s15, 0
    %p57 = por %p55, %p56
    %p58 = scmp.ne.s32.totalorder %s44, %s45
    %p59 = scmp.eq.s32.totalorder %s16, 3
    %p60 = por %p58, %p59
    %p62 = scmp.ne.s32.totalorder %s45, %s61
    %p63 = scmp.eq.s32.totalorder %s16, 0
    %p64 = por %p62, %p63
    %s65 = ssub.s32 %s19, %s28
    %p66 = scmp.eq.s32.totalorder %s65, 0
    %s68 = sadd.s32 %s67, 1
    %s69 = scalar_select %p66, %s67, %s68
    %p72 = pneg %p66
    %p73 = scmp.eq.s32.totalorder %s10, 3
    %p74 = por %p72, %p73
    %p75 = scmp.ne.s32.totalorder %s67, %s70
    %p76 = scmp.eq.s32.totalorder %s10, 0
    %p77 = por %p75, %p76
    %p78 = scmp.ne.s32.totalorder %s67, %s70
    %p79 = scmp.eq.s32.totalorder %s15, 3
    %p80 = por %p78, %p79
    %p81 = scmp.ne.s32.totalorder %s70, %s71
    %p82 = scmp.eq.s32.totalorder %s15, 0
    %p83 = por %p81, %p82
    %p84 = scmp.ne.s32.totalorder %s70, %s71
    %p85 = scmp.eq.s32.totalorder %s16, 3
    %p86 = por %p84, %p85
    %p88 = scmp.ne.s32.totalorder %s71, %s87
    %p89 = scmp.eq.s32.totalorder %s16, 0
    %p90 = por %p88, %p89
    %s91 = ssub.s32 %s19, %s28
    %p92 = scmp.eq.s32.totalorder %s91, 0
    %s94 = sadd.s32 %s93, 1
    %s95 = scalar_select %p92, %s93, %s94
    %p98 = pneg %p92
    %p99 = scmp.eq.s32.totalorder %s10, 3
    %p100 = por %p98, %p99
    %p101 = scmp.ne.s32.totalorder %s93, %s96
    %p102 = scmp.eq.s32.totalorder %s10, 0
    %p103 = por %p101, %p102
    %p104 = scmp.ne.s32.totalorder %s93, %s96
    %p105 = scmp.eq.s32.totalorder %s15, 3
    %p106 = por %p104, %p105
    %p107 = scmp.ne.s32.totalorder %s96, %s97
    %p108 = scmp.eq.s32.totalorder %s15, 0
    %p109 = por %p107, %p108
    %p110 = scmp.ne.s32.totalorder %s96, %s97
    %p111 = scmp.eq.s32.totalorder %s16, 3
    %p112 = por %p110, %p111
    %p114 = scmp.ne.s32.totalorder %s97, %s113
    %p115 = scmp.eq.s32.totalorder %s16, 0
    %p116 = por %p114, %p115
    %s117 = ssub.s32 %s19, %s28
    %p118 = scmp.eq.s32.totalorder %s117, 0
    %s120 = sadd.s32 %s119, 1
    %s121 = scalar_select %p118, %s119, %s120
    %p124 = pneg %p118
    %p125 = scmp.eq.s32.totalorder %s10, 3
    %p126 = por %p124, %p125
    %p127 = scmp.ne.s32.totalorder %s119, %s122
    %p128 = scmp.eq.s32.totalorder %s10, 0
    %p129 = por %p127, %p128
    %p130 = scmp.ne.s32.totalorder %s119, %s122
    %p131 = scmp.eq.s32.totalorder %s15, 3
    %p132 = por %p130, %p131
    %p133 = scmp.ne.s32.totalorder %s122, %s123
    %p134 = scmp.eq.s32.totalorder %s15, 0
    %p135 = por %p133, %p134
    %p136 = scmp.ne.s32.totalorder %s122, %s123
    %p137 = scmp.eq.s32.totalorder %s16, 3
    %p138 = por %p136, %p137
    %p140 = scmp.ne.s32.totalorder %s123, %s139
    %p141 = scmp.eq.s32.totalorder %s16, 0
    %p142 = por %p140, %p141
    %s143 = ssub.s32 %s17, %s36
    %s144 = ssub.s32 %s18, %s32
    %s145 = sor.u32 %s143, %s144
    %s146 = ssub.s32 %s19, %s28
    %s147 = sor.u32 %s145, %s146
    %p148 = scmp.eq.s32.totalorder %s147, 0
    %s150 = sadd.s32 %s149, 1
    %s151 = scalar_select %p148, %s149, %s150
    %p154 = pneg %p148
    %p155 = scmp.eq.s32.totalorder %s10, 3
    %p156 = por %p154, %p155
    %p157 = scmp.ne.s32.totalorder %s149, %s152
    %p158 = scmp.eq.s32.totalorder %s10, 0
    %p159 = por %p157, %p158
    %p160 = scmp.ne.s32.totalorder %s149, %s152
    %p161 = scmp.eq.s32.totalorder %s15, 3
    %p162 = por %p160, %p161
    %p163 = scmp.ne.s32.totalorder %s152, %s153
    %p164 = scmp.eq.s32.totalorder %s15, 0
    %p165 = por %p163, %p164
    %p166 = scmp.ne.s32.totalorder %s152, %s153
    %p167 = scmp.eq.s32.totalorder %s16, 3
    %p168 = por %p166, %p167
    %p170 = scmp.ne.s32.totalorder %s153, %s169
    %p171 = scmp.eq.s32.totalorder %s16, 0
    %p172 = por %p170, %p171
    %p173 = scmp.le.s32.totalorder 1, %s10
    %p174 = scmp.lt.s32.totalorder %s10, 5
    %p175 = pnand %p173, %p174
    %p176 = pneg %p175
    // Predicated region
    $region9: #{tpu_custom_call.1} parent=5 // pred_check
      _
    $region10: #{tpu_custom_call.1} parent=5 // pred_check_branch
      %178 = sbr.rel (%p175) target = $region12
    $region11: #{tpu_custom_call.1} parent=5 // pred_region
      %s179 = ssub.s32 %s10, 1
      // Predicated region
      $region13: #{tpu_custom_call.1} parent=11 // pred_check
        %p180 = pneg %p83
      $region14: #{tpu_custom_call.1} parent=11 // pred_check_branch
        %182 = sbr.rel (%p180) target = $region16
      $region15: #{tpu_custom_call.1} parent=11 // pred_region
        %p183 = scmp.lt.s32.totalorder %s22, 0
        %s184 = scalar_select %p183, %s22, 0
        %s185 = smul.addr %s184, 4
        %s186 = scalar_lea.vmem %s1, %s185
      $region16: #{tpu_custom_call.1} parent=11 // pred_fallthru
        _
      // Predicated region
      $region17: #{tpu_custom_call.1} parent=11 // pred_check
        %p187 = pneg %p109
      $region18: #{tpu_custom_call.1} parent=11 // pred_check_branch
        %189 = sbr.rel (%p187) target = $region20
      $region19: #{tpu_custom_call.1} parent=11 // pred_region
        %p190 = scmp.lt.s32.totalorder %s22, 0
        %s191 = scalar_select %p190, %s22, 0
        %s192 = scalar_lea.vmem %s2, %s191
      $region20: #{tpu_custom_call.1} parent=11 // pred_fallthru
        _
      // Predicated region
      $region21: #{tpu_custom_call.1} parent=11 // pred_check
        %p193 = pneg %p135
      $region22: #{tpu_custom_call.1} parent=11 // pred_check_branch
        %195 = sbr.rel (%p193) target = $region24
      $region23: #{tpu_custom_call.1} parent=11 // pred_region
        %p196 = scmp.lt.s32.totalorder %s22, 0
        %s197 = scalar_select %p196, %s22, 0
        %s198 = scalar_lea.vmem %s3, %s197
      $region24: #{tpu_custom_call.1} parent=11 // pred_fallthru
        _
    $region12: #{tpu_custom_call.1} parent=5 // pred_fallthru
      _
    %p199 = scmp.lt.s32.totalorder %s10, 4
    // Predicated region
    $region25: #{tpu_custom_call.1} parent=5 // pred_check
      %p200 = pneg %p199
    $region26: #{tpu_custom_call.1} parent=5 // pred_check_branch
      %202 = sbr.rel (%p200) target = $region28
    $region27: #{tpu_custom_call.1} parent=5 // pred_region
      // Predicated region
      $region29: #{tpu_custom_call.1} parent=27 // pred_check
        %p203 = pneg %p51
      $region30: #{tpu_custom_call.1} parent=27 // pred_check_branch
        %205 = sbr.rel (%p203) target = $region32
      $region31: #{tpu_custom_call.1} parent=27 // pred_region
        %p206 = scmp.lt.s32.totalorder %s17, 1
        %s207 = scalar_select %p206, %s17, 1
        %p208 = scmp.lt.s32.totalorder %s18, 1
        %s209 = scalar_select %p208, %s18, 1
        %s210 = smul.addr %s209, 30
        %s211 = smul.addr %s207, 60
        %s212 = sadd.s32 %s210, %s211
        %s213 = smul.addr %s212, 8
        %s214 = scalar_lea.vmem %s0, %s213
      $region32: #{tpu_custom_call.1} parent=27 // pred_fallthru
        _
    $region28: #{tpu_custom_call.1} parent=5 // pred_fallthru
      _
    %p215 = scmp.le.s32.totalorder 1, %s10
    %p216 = scmp.lt.s32.totalorder %s10, 5
    %p217 = pnand %p215, %p216
    %p218 = pneg %p217
    // Predicated region
    $region33: #{tpu_custom_call.1} parent=5 // pred_check
      _
    $region34: #{tpu_custom_call.1} parent=5 // pred_check_branch
      %220 = sbr.rel (%p217) target = $region36
    $region35: #{tpu_custom_call.1} parent=5 // pred_region
      %s221 = ssub.s32 %s10, 1
      %p222 = scmp.lt.s32.totalorder %s20, 1
      %s223 = scalar_select %p222, %s20, 1
      %p224 = scmp.lt.s32.totalorder %s21, 1
      %s225 = scalar_select %p224, %s21, 1
      %s226 = smul.addr %s225, 30
      %s227 = smul.addr %s223, 60
      %s228 = sadd.s32 %s226, %s227
      %s229 = smul.addr %s228, 8
      %s230 = scalar_lea.vmem %s0, %s229
      %p231 = pneg %p57
      %p232 = pneg %p54
      %p233 = scmp.lt.s32.totalorder %s22, 0
      %s234 = scalar_select %p233, %s22, 0
      %s235 = smul.addr %s234, 4
      %s236 = scalar_lea.vmem %s1, %s235
      %p237 = pneg %p83
      %p238 = pneg %p80
      %p239 = scmp.lt.s32.totalorder %s22, 0
      %s240 = scalar_select %p239, %s22, 0
      %s241 = scalar_lea.vmem %s2, %s240
      %p242 = pneg %p109
      %p243 = pneg %p106
      %p244 = scmp.lt.s32.totalorder %s22, 0
      %s245 = scalar_select %p244, %s22, 0
      %s246 = scalar_lea.vmem %s3, %s245
      %p247 = pneg %p135
      %p248 = pneg %p132
      %p249 = pneg %p165
      %p250 = pneg %p162
      %s251 = smul.u32 8, %s21
      %p252 = scmp.lt.s32.totalorder %s20, 1
      %s253 = scalar_select %p252, %s20, 1
      %p254 = scmp.lt.s32.totalorder %s251, 15
      %s255 = scalar_select %p254, %s251, 15
      %p256 = scmp.lt.s32.totalorder %s22, 0
      %s257 = scalar_select %p256, %s22, 0
      %s258 = smul.addr %s255, 2
      %s259 = sadd.s32 %s257, %s258
      %s260 = smul.addr %s253, 32
      %s261 = sadd.s32 %s259, %s260
      %s262 = smul.addr %s261, 8
      %s263 = scalar_lea.vmem %s4, %s262
      %p264 = scmp.lt.s32.totalorder %s20, 1
      %s265 = scalar_select %p264, %s20, 1
      %p266 = scmp.lt.s32.totalorder %s21, 1
      %s267 = scalar_select %p266, %s21, 1
      %s268 = smul.addr %s267, 30
      %s269 = smul.addr %s265, 60
      %s270 = sadd.s32 %s268, %s269
      %s271 = smul.addr %s270, 8
      %s272 = scalar_lea.vmem %s0, %s271
      %p273 = scmp.lt.s32.totalorder %s22, 0
      %s274 = scalar_select %p273, %s22, 0
      %s275 = smul.addr %s274, 4
      %s276 = scalar_lea.vmem %s1, %s275
      %p277 = scmp.lt.s32.totalorder %s22, 0
      %s278 = scalar_select %p277, %s22, 0
      %s279 = scalar_lea.vmem %s2, %s278
      %p280 = scmp.lt.s32.totalorder %s22, 0
      %s281 = scalar_select %p280, %s22, 0
      %s282 = scalar_lea.vmem %s3, %s281
      %s283 = smul.u32 8, %s21
      %p284 = scmp.lt.s32.totalorder %s20, 1
      %s285 = scalar_select %p284, %s20, 1
      %p286 = scmp.lt.s32.totalorder %s283, 15
      %s287 = scalar_select %p286, %s283, 15
      %p288 = scmp.lt.s32.totalorder %s22, 0
      %s289 = scalar_select %p288, %s22, 0
      %s290 = smul.addr %s287, 2
      %s291 = sadd.s32 %s289, %s290
      %s292 = smul.addr %s285, 32
      %s293 = sadd.s32 %s291, %s292
      %s294 = smul.addr %s293, 8
      %s295 = scalar_lea.vmem %s4, %s294
      %s296 = smul.u32 8, %s21
      %v297 = vld [vmem:[%s272] sm:$0xff]
      %v298 = vld [vmem:[%s272 + $0x8] sm:$0xff]
      %v299 = vld [vmem:[%s272 + $0x10] sm:$0x3]
      %v300 = vld [vmem:[%s272 + $0x18] sm:$0xff]
      %v301 = vld [vmem:[%s272 + $0x20] sm:$0xff]
      %v302 = vld [vmem:[%s272 + $0x28] sm:$0x3]
      %v303 = vld [vmem:[%s272 + $0x30] sm:$0xff]
      %v304 = vld [vmem:[%s272 + $0x38] sm:$0xff]
      %v305 = vld [vmem:[%s272 + $0x40] sm:$0x3]
      %v306 = vld [vmem:[%s272 + $0x48] sm:$0xff]
      %v307 = vld [vmem:[%s272 + $0x50] sm:$0xff]
      %v308 = vld [vmem:[%s272 + $0x58] sm:$0x3]
      %v309 = vld [vmem:[%s272 + $0x60] sm:$0xff]
      %v310 = vld [vmem:[%s272 + $0x68] sm:$0xff]
      %v311 = vld [vmem:[%s272 + $0x70] sm:$0x3]
      %v312 = vld [vmem:[%s272 + $0x78] sm:$0xff]
      %v313 = vld [vmem:[%s272 + $0x80] sm:$0xff]
      %v314 = vld [vmem:[%s272 + $0x88] sm:$0x3]
      %v315 = vld [vmem:[%s272 + $0x90] sm:$0xff]
      %v316 = vld [vmem:[%s272 + $0x98] sm:$0xff]
      %v317 = vld [vmem:[%s272 + $0xa0] sm:$0x3]
      %v318 = vld [vmem:[%s272 + $0xa8] sm:$0xff]
      %v319 = vld [vmem:[%s272 + $0xb0] sm:$0xff]
      %v320 = vld [vmem:[%s272 + $0xb8] sm:$0x3]
      %v321 = vld [vmem:[%s272 + $0xc0] sm:$0xff]
      %v322 = vld [vmem:[%s272 + $0xc8] sm:$0xff]
      %v323 = vld [vmem:[%s272 + $0xd0] sm:$0x3]
      %v324 = vld [vmem:[%s272 + $0xd8] sm:$0xff]
      %v325 = vld [vmem:[%s272 + $0xe0] sm:$0xff]
      %v326 = vld [vmem:[%s272 + $0xe8] sm:$0x3]
      %v327 = vld [vmem:[%s276] sm:$0xf]
      %vm328 = vcmask 31744
      %v330 = vsel %vm328, %v297, 0
      %v333 = vsel %vm328, %v298, 0
      %v336 = vsel %vm328, %v300, 0
      %v339 = vsel %vm328, %v301, 0
      %v342 = vsel %vm328, %v303, 0
      %v345 = vsel %vm328, %v304, 0
      %v348 = vsel %vm328, %v306, 0
      %v351 = vsel %vm328, %v307, 0
      %v354 = vsel %vm328, %v309, 0
      %v357 = vsel %vm328, %v310, 0
      %v360 = vsel %vm328, %v312, 0
      %v363 = vsel %vm328, %v313, 0
      %v366 = vsel %vm328, %v315, 0
      %v369 = vsel %vm328, %v316, 0
      %v372 = vsel %vm328, %v318, 0
      %v375 = vsel %vm328, %v319, 0
      %vm377 = vcmask 1043456
      %v379 = vsel %vm377, %v327, 0
      %381 = vmatprep.subr.mxu0 0.0
      %382 = vmatpush1.msra.mxu0 %v379
      %383 = vmatprep.subr.mxu0 0.0
      %384 = vmatpush1.msra.mxu0 0.0
      %385 = vmatprep.subr.mxu0 0.0
      %386 = vmatpush1.msra.mxu0 0.0
      %387 = vmatprep.subr.mxu0 0.0
      %388 = vmatpush1.msra.mxu0 0.0
      %389 = vmatprep.subr.mxu0 0.0
      %390 = vmatpush1.msra.mxu0 0.0
      %391 = vmatprep.subr.mxu0 0.0
      %392 = vmatpush1.msra.mxu0 0.0
      %393 = vmatprep.subr.mxu0 0.0
      %394 = vmatpush1.msra.mxu0 0.0
      %395 = vmatprep.subr.mxu0 0.0
      %396 = vmatpush1.msra.mxu0 0.0
      %397 = vmatprep.subr.mxu0 0.0
      %398 = vmatpush1.msra.mxu0 0.0
      %399 = vmatprep.subr.mxu0 0.0
      %400 = vmatpush1.msra.mxu0 0.0
      %401 = vmatprep.subr.mxu0 0.0
      %402 = vmatpush1.msra.mxu0 0.0
      %403 = vmatprep.subr.mxu0 0.0
      %404 = vmatpush1.msra.mxu0 0.0
      %405 = vmatprep.subr.mxu0 0.0
      %406 = vmatpush1.msra.mxu0 0.0
      %407 = vmatprep.subr.mxu0 0.0
      %408 = vmatpush1.msra.mxu0 0.0
      %409 = vmatprep.subr.mxu0 0.0
      %410 = vmatpush1.msra.mxu0 0.0
      %411 = vmatprep.subr.mxu0 0.0
      %412 = vmatpush1.msra.mxu0 0.0
      %413 = vmatprep.subr.mxu0 0.0
      %414 = vmatpush1.msra.mxu0 0.0
      %415 = vmatprep.subr.mxu0 0.0
      %416 = vmatpush1.msra.mxu0 0.0
      %417 = vmatprep.subr.mxu0 0.0
      %418 = vmatpush1.msra.mxu0 0.0
      %419 = vmatprep.subr.mxu0 0.0
      %420 = vmatpush1.msra.mxu0 0.0
      %421 = vmatprep.subr.mxu0 0.0
      %422 = vmatpush1.msra.mxu0 0.0
      %423 = vmatprep.subr.mxu0 0.0
      %424 = vmatpush1.msra.mxu0 0.0
      %425 = vmatprep.subr.mxu0 0.0
      %426 = vmatpush1.msra.mxu0 0.0
      %427 = vmatprep.subr.mxu0 0.0
      %428 = vmatpush1.msra.mxu0 0.0
      %429 = vmatprep.subr.mxu0 0.0
      %430 = vmatpush1.msra.mxu0 0.0
      %431 = vmatprep.subr.mxu0 0.0
      %432 = vmatpush1.msra.mxu0 0.0
      %433 = vmatprep.subr.mxu0 0.0
      %434 = vmatpush1.msra.mxu0 0.0
      %435 = vmatprep.subr.mxu0 0.0
      %436 = vmatpush1.msra.mxu0 0.0
      %437 = vmatprep.subr.mxu0 0.0
      %438 = vmatpush1.msra.mxu0 0.0
      %439 = vmatprep.subr.mxu0 0.0
      %440 = vmatpush1.msra.mxu0 0.0
      %441 = vmatprep.subr.mxu0 0.0
      %442 = vmatpush1.msra.mxu0 0.0
      %443 = vmatprep.subr.mxu0 0.0
      %444 = vmatpush1.msra.mxu0 0.0
      %445 = vmatprep.mubr.f32.mxu0 0.0
      %446 = vmatmul.mubr.f32.gmra.mrb[0].mxu0 %v330
      %v447 = vpop.f32.mrb[0].mxu0
      %v448 = vadd.f32 0.0, %v447
      %v449 = vpop.f32.mrb[0].mxu0
      %450 = vmatprep.mubr.f32.mxu0 0.0
      %451 = vmatmul.mubr.f32.gmra.mrb[0].mxu0 %v333
      %v452 = vpop.f32.mrb[0].mxu0
      %v453 = vadd.f32 0.0, %v452
      %v454 = vpop.f32.mrb[0].mxu0
      %455 = vmatprep.mubr.f32.mxu0 0.0
      %456 = vmatmul.mubr.f32.gmra.mrb[0].mxu0 %v336
      %v457 = vpop.f32.mrb[0].mxu0
      %v458 = vadd.f32 0.0, %v457
      %v459 = vpop.f32.mrb[0].mxu0
      %460 = vmatprep.mubr.f32.mxu0 0.0
      %461 = vmatmul.mubr.f32.gmra.mrb[0].mxu0 %v339
      %v462 = vpop.f32.mrb[0].mxu0
      %v463 = vadd.f32 0.0, %v462
      %v464 = vpop.f32.mrb[0].mxu0
      %465 = vmatprep.mubr.f32.mxu0 0.0
      %466 = vmatmul.mubr.f32.gmra.mrb[0].mxu0 %v342
      %v467 = vpop.f32.mrb[0].mxu0
      %v468 = vadd.f32 0.0, %v467
      %v469 = vpop.f32.mrb[0].mxu0
      %470 = vmatprep.mubr.f32.mxu0 0.0
      %471 = vmatmul.mubr.f32.gmra.mrb[0].mxu0 %v345
      %v472 = vpop.f32.mrb[0].mxu0
      %v473 = vadd.f32 0.0, %v472
      %v474 = vpop.f32.mrb[0].mxu0
      %475 = vmatprep.mubr.f32.mxu0 0.0
      %476 = vmatmul.mubr.f32.gmra.mrb[0].mxu0 %v348
      %v477 = vpop.f32.mrb[0].mxu0
      %v478 = vadd.f32 0.0, %v477
      %v479 = vpop.f32.mrb[0].mxu0
      %480 = vmatprep.mubr.f32.mxu0 0.0
      %481 = vmatmul.mubr.f32.gmra.mrb[0].mxu0 %v351
      %v482 = vpop.f32.mrb[0].mxu0
      %v483 = vadd.f32 0.0, %v482
      %v484 = vpop.f32.mrb[0].mxu0
      %485 = vmatprep.mubr.f32.mxu0 0.0
      %486 = vmatmul.mubr.f32.gmra.mrb[0].mxu0 %v354
      %v487 = vpop.f32.mrb[0].mxu0
      %v488 = vadd.f32 0.0, %v487
      %v489 = vpop.f32.mrb[0].mxu0
      %490 = vmatprep.mubr.f32.mxu0 0.0
      %491 = vmatmul.mubr.f32.gmra.mrb[0].mxu0 %v357
      %v492 = vpop.f32.mrb[0].mxu0
      %v493 = vadd.f32 0.0, %v492
      %v494 = vpop.f32.mrb[0].mxu0
      %495 = vmatprep.mubr.f32.mxu0 0.0
      %496 = vmatmul.mubr.f32.gmra.mrb[0].mxu0 %v360
      %v497 = vpop.f32.mrb[0].mxu0
      %v498 = vadd.f32 0.0, %v497
      %v499 = vpop.f32.mrb[0].mxu0
      %500 = vmatprep.mubr.f32.mxu0 0.0
      %501 = vmatmul.mubr.f32.gmra.mrb[0].mxu0 %v363
      %v502 = vpop.f32.mrb[0].mxu0
      %v503 = vadd.f32 0.0, %v502
      %v504 = vpop.f32.mrb[0].mxu0
      %505 = vmatprep.mubr.f32.mxu0 0.0
      %506 = vmatmul.mubr.f32.gmra.mrb[0].mxu0 %v366
      %v507 = vpop.f32.mrb[0].mxu0
      %v508 = vadd.f32 0.0, %v507
      %v509 = vpop.f32.mrb[0].mxu0
      %510 = vmatprep.mubr.f32.mxu0 0.0
      %511 = vmatmul.mubr.f32.gmra.mrb[0].mxu0 %v369
      %v512 = vpop.f32.mrb[0].mxu0
      %v513 = vadd.f32 0.0, %v512
      %v514 = vpop.f32.mrb[0].mxu0
      %515 = vmatprep.mubr.f32.mxu0 0.0
      %516 = vmatmul.mubr.f32.gmra.mrb[0].mxu0 %v372
      %v517 = vpop.f32.mrb[0].mxu0
      %v518 = vadd.f32 0.0, %v517
      %v519 = vpop.f32.mrb[0].mxu0
      %520 = vmatprep.mubr.f32.mxu0 0.0
      %521 = vmatmul.mubr.f32.gmra.mrb[0].mxu0 %v375
      %v522 = vpop.f32.mrb[0].mxu0
      %v523 = vadd.f32 0.0, %v522
      %v524 = vpop.f32.mrb[0].mxu0
      %525 = vdwg.mxu0
      %vm526 = vcmask 64512
      %527 = vst.msk [vmem:[#allocation2] sm:$0xff] %vm526, %v448
      %528 = vst.msk [vmem:[#allocation2 + $0x8] sm:$0xff] %vm526, %v453
      %529 = vst.msk [vmem:[#allocation2 + $0x10] sm:$0xff] %vm526, %v458
      %530 = vst.msk [vmem:[#allocation2 + $0x18] sm:$0xff] %vm526, %v463
      %531 = vst.msk [vmem:[#allocation2 + $0x20] sm:$0xff] %vm526, %v468
      %532 = vst.msk [vmem:[#allocation2 + $0x28] sm:$0xff] %vm526, %v473
      %533 = vst.msk [vmem:[#allocation2 + $0x30] sm:$0xff] %vm526, %v478
      %534 = vst.msk [vmem:[#allocation2 + $0x38] sm:$0xff] %vm526, %v483
      %535 = vst.msk [vmem:[#allocation2 + $0x40] sm:$0xff] %vm526, %v488
      %536 = vst.msk [vmem:[#allocation2 + $0x48] sm:$0xff] %vm526, %v493
      %537 = vst.msk [vmem:[#allocation2 + $0x50] sm:$0xff] %vm526, %v498
      %538 = vst.msk [vmem:[#allocation2 + $0x58] sm:$0xff] %vm526, %v503
      %539 = vst.msk [vmem:[#allocation2 + $0x60] sm:$0xff] %vm526, %v508
      %540 = vst.msk [vmem:[#allocation2 + $0x68] sm:$0xff] %vm526, %v513
      %541 = vst.msk [vmem:[#allocation2 + $0x70] sm:$0xff] %vm526, %v518
      %542 = vst.msk [vmem:[#allocation2 + $0x78] sm:$0xff] %vm526, %v523
      %s543 = scalar_lea.vmem %s276, 4
      %v544 = vld [vmem:[%s543] sm:$0xf]
      %vm553 = vcmask 1046528
      %v554 = vrot.slane %v297, 1
      %v555 = vrot.slane %v298, 1
      %v556 = vsel %vm553, %v554, %v555
      %v557 = vrot.slane %v299, 1
      %v558 = vsel %vm553, %v555, %v557
      %v559 = vrot.slane %v300, 1
      %v560 = vrot.slane %v301, 1
      %v561 = vsel %vm553, %v559, %v560
      %v562 = vrot.slane %v302, 1
      %v563 = vsel %vm553, %v560, %v562
      %v564 = vrot.slane %v303, 1
      %v565 = vrot.slane %v304, 1
      %v566 = vsel %vm553, %v564, %v565
      %v567 = vrot.slane %v305, 1
      %v568 = vsel %vm553, %v565, %v567
      %v569 = vrot.slane %v306, 1
      %v570 = vrot.slane %v307, 1
      %v571 = vsel %vm553, %v569, %v570
      %v572 = vrot.slane %v308, 1
      %v573 = vsel %vm553, %v570, %v572
      %v574 = vrot.slane %v309, 1
      %v575 = vrot.slane %v310, 1
      %v576 = vsel %vm553, %v574, %v575
      %v577 = vrot.slane %v311, 1
      %v578 = vsel %vm553, %v575, %v577
      %v579 = vrot.slane %v312, 1
      %v580 = vrot.slane %v313, 1
      %v581 = vsel %vm553, %v579, %v580
      %v582 = vrot.slane %v314, 1
      %v583 = vsel %vm553, %v580, %v582
      %v584 = vrot.slane %v315, 1
      %v585 = vrot.slane %v316, 1
      %v586 = vsel %vm553, %v584, %v585
      %v587 = vrot.slane %v317, 1
      %v588 = vsel %vm553, %v585, %v587
      %v589 = vrot.slane %v318, 1
      %v590 = vrot.slane %v319, 1
      %v591 = vsel %vm553, %v589, %v590
      %v592 = vrot.slane %v320, 1
      %v593 = vsel %vm553, %v590, %v592
      %v594 = vsel %vm328, %v556, 0
      %v596 = vsel %vm328, %v558, 0
      %v598 = vsel %vm328, %v561, 0
      %v600 = vsel %vm328, %v563, 0
      %v602 = vsel %vm328, %v566, 0
      %v604 = vsel %vm328, %v568, 0
      %v606 = vsel %vm328, %v571, 0
      %v608 = vsel %vm328, %v573, 0
      %v610 = vsel %vm328, %v576, 0
      %v612 = vsel %vm328, %v578, 0
      %v614 = vsel %vm328, %v581, 0
      %v616 = vsel %vm328, %v583, 0
      %v618 = vsel %vm328, %v586, 0
      %v620 = vsel %vm328, %v588, 0
      %v622 = vsel %vm328, %v591, 0
      %v624 = vsel %vm328, %v593, 0
      %v627 = vsel %vm377, %v544, 0
      %629 = vmatprep.subr.mxu0 0.0
      %630 = vmatpush1.msra.mxu0 %v627
      %631 = vmatprep.subr.mxu0 0.0
      %632 = vmatpush1.msra.mxu0 0.0
      %633 = vmatprep.subr.mxu0 0.0
      %634 = vmatpush1.msra.mxu0 0.0
      %635 = vmatprep.subr.mxu0 0.0
      %636 = vmatpush1.msra.mxu0 0.0
      %637 = vmatprep.subr.mxu0 0.0
      %638 = vmatpush1.msra.mxu0 0.0
      %639 = vmatprep.subr.mxu0 0.0
      %640 = vmatpush1.msra.mxu0 0.0
      %641 = vmatprep.subr.mxu0 0.0
      %642 = vmatpush1.msra.mxu0 0.0
      %643 = vmatprep.subr.mxu0 0.0
      %644 = vmatpush1.msra.mxu0 0.0
      %645 = vmatprep.subr.mxu0 0.0
      %646 = vmatpush1.msra.mxu0 0.0
      %647 = vmatprep.subr.mxu0 0.0
      %648 = vmatpush1.msra.mxu0 0.0
      %649 = vmatprep.subr.mxu0 0.0
      %650 = vmatpush1.msra.mxu0 0.0
      %651 = vmatprep.subr.mxu0 0.0
      %652 = vmatpush1.msra.mxu0 0.0
      %653 = vmatprep.subr.mxu0 0.0
      %654 = vmatpush1.msra.mxu0 0.0
      %655 = vmatprep.subr.mxu0 0.0
      %656 = vmatpush1.msra.mxu0 0.0
      %657 = vmatprep.subr.mxu0 0.0
      %658 = vmatpush1.msra.mxu0 0.0
      %659 = vmatprep.subr.mxu0 0.0
      %660 = vmatpush1.msra.mxu0 0.0
      %661 = vmatprep.subr.mxu0 0.0
      %662 = vmatpush1.msra.mxu0 0.0
      %663 = vmatprep.subr.mxu0 0.0
      %664 = vmatpush1.msra.mxu0 0.0
      %665 = vmatprep.subr.mxu0 0.0
      %666 = vmatpush1.msra.mxu0 0.0
      %667 = vmatprep.subr.mxu0 0.0
      %668 = vmatpush1.msra.mxu0 0.0
      %669 = vmatprep.subr.mxu0 0.0
      %670 = vmatpush1.msra.mxu0 0.0
      %671 = vmatprep.subr.mxu0 0.0
      %672 = vmatpush1.msra.mxu0 0.0
      %673 = vmatprep.subr.mxu0 0.0
      %674 = vmatpush1.msra.mxu0 0.0
      %675 = vmatprep.subr.mxu0 0.0
      %676 = vmatpush1.msra.mxu0 0.0
      %677 = vmatprep.subr.mxu0 0.0
      %678 = vmatpush1.msra.mxu0 0.0
      %679 = vmatprep.subr.mxu0 0.0
      %680 = vmatpush1.msra.mxu0 0.0
      %681 = vmatprep.subr.mxu0 0.0
      %682 = vmatpush1.msra.mxu0 0.0
      %683 = vmatprep.subr.mxu0 0.0
      %684 = vmatpush1.msra.mxu0 0.0
      %685 = vmatprep.subr.mxu0 0.0
      %686 = vmatpush1.msra.mxu0 0.0
      %687 = vmatprep.subr.mxu0 0.0
      %688 = vmatpush1.msra.mxu0 0.0
      %689 = vmatprep.subr.mxu0 0.0
      %690 = vmatpush1.msra.mxu0 0.0
      %691 = vmatprep.subr.mxu0 0.0
      %692 = vmatpush1.msra.mxu0 0.0
      %693 = vmatprep.mubr.f32.mxu0 0.0
      %694 = vmatmul.mubr.f32.gmra.mrb[0].mxu0 %v594
      %v695 = vpop.f32.mrb[0].mxu0
      %v696 = vadd.f32 0.0, %v695
      %v697 = vpop.f32.mrb[0].mxu0
      %698 = vmatprep.mubr.f32.mxu0 0.0
      %699 = vmatmul.mubr.f32.gmra.mrb[0].mxu0 %v596
      %v700 = vpop.f32.mrb[0].mxu0
      %v701 = vadd.f32 0.0, %v700
      %v702 = vpop.f32.mrb[0].mxu0
      %703 = vmatprep.mubr.f32.mxu0 0.0
      %704 = vmatmul.mubr.f32.gmra.mrb[0].mxu0 %v598
      %v705 = vpop.f32.mrb[0].mxu0
      %v706 = vadd.f32 0.0, %v705
      %v707 = vpop.f32.mrb[0].mxu0
      %708 = vmatprep.mubr.f32.mxu0 0.0
      %709 = vmatmul.mubr.f32.gmra.mrb[0].mxu0 %v600
      %v710 = vpop.f32.mrb[0].mxu0
      %v711 = vadd.f32 0.0, %v710
      %v712 = vpop.f32.mrb[0].mxu0
      %713 = vmatprep.mubr.f32.mxu0 0.0
      %714 = vmatmul.mubr.f32.gmra.mrb[0].mxu0 %v602
      %v715 = vpop.f32.mrb[0].mxu0
      %v716 = vadd.f32 0.0, %v715
      %v717 = vpop.f32.mrb[0].mxu0
      %718 = vmatprep.mubr.f32.mxu0 0.0
      %719 = vmatmul.mubr.f32.gmra.mrb[0].mxu0 %v604
      %v720 = vpop.f32.mrb[0].mxu0
      %v721 = vadd.f32 0.0, %v720
      %v722 = vpop.f32.mrb[0].mxu0
      %723 = vmatprep.mubr.f32.mxu0 0.0
      %724 = vmatmul.mubr.f32.gmra.mrb[0].mxu0 %v606
      %v725 = vpop.f32.mrb[0].mxu0
      %v726 = vadd.f32 0.0, %v725
      %v727 = vpop.f32.mrb[0].mxu0
      %728 = vmatprep.mubr.f32.mxu0 0.0
      %729 = vmatmul.mubr.f32.gmra.mrb[0].mxu0 %v608
      %v730 = vpop.f32.mrb[0].mxu0
      %v731 = vadd.f32 0.0, %v730
      %v732 = vpop.f32.mrb[0].mxu0
      %733 = vmatprep.mubr.f32.mxu0 0.0
      %734 = vmatmul.mubr.f32.gmra.mrb[0].mxu0 %v610
      %v735 = vpop.f32.mrb[0].mxu0
      %v736 = vadd.f32 0.0, %v735
      %v737 = vpop.f32.mrb[0].mxu0
      %738 = vmatprep.mubr.f32.mxu0 0.0
      %739 = vmatmul.mubr.f32.gmra.mrb[0].mxu0 %v612
      %v740 = vpop.f32.mrb[0].mxu0
      %v741 = vadd.f32 0.0, %v740
      %v742 = vpop.f32.mrb[0].mxu0
      %743 = vmatprep.mubr.f32.mxu0 0.0
      %744 = vmatmul.mubr.f32.gmra.mrb[0].mxu0 %v614
      %v745 = vpop.f32.mrb[0].mxu0
      %v746 = vadd.f32 0.0, %v745
      %v747 = vpop.f32.mrb[0].mxu0
      %748 = vmatprep.mubr.f32.mxu0 0.0
      %749 = vmatmul.mubr.f32.gmra.mrb[0].mxu0 %v616
      %v750 = vpop.f32.mrb[0].mxu0
      %v751 = vadd.f32 0.0, %v750
      %v752 = vpop.f32.mrb[0].mxu0
      %753 = vmatprep.mubr.f32.mxu0 0.0
      %754 = vmatmul.mubr.f32.gmra.mrb[0].mxu0 %v618
      %v755 = vpop.f32.mrb[0].mxu0
      %v756 = vadd.f32 0.0, %v755
      %v757 = vpop.f32.mrb[0].mxu0
      %758 = vmatprep.mubr.f32.mxu0 0.0
      %759 = vmatmul.mubr.f32.gmra.mrb[0].mxu0 %v620
      %v760 = vpop.f32.mrb[0].mxu0
      %v761 = vadd.f32 0.0, %v760
      %v762 = vpop.f32.mrb[0].mxu0
      %763 = vmatprep.mubr.f32.mxu0 0.0
      %764 = vmatmul.mubr.f32.gmra.mrb[0].mxu0 %v622
      %v765 = vpop.f32.mrb[0].mxu0
      %v766 = vadd.f32 0.0, %v765
      %v767 = vpop.f32.mrb[0].mxu0
      %768 = vmatprep.mubr.f32.mxu0 0.0
      %769 = vmatmul.mubr.f32.gmra.mrb[0].mxu0 %v624
      %v770 = vpop.f32.mrb[0].mxu0
      %v771 = vadd.f32 0.0, %v770
      %v772 = vpop.f32.mrb[0].mxu0
      %773 = vdwg.mxu0
      %v774 = vld [vmem:[#allocation2] sm:$0xff]
      %v775 = vld [vmem:[#allocation2 + $0x8] sm:$0xff]
      %v776 = vld [vmem:[#allocation2 + $0x10] sm:$0xff]
      %v777 = vld [vmem:[#allocation2 + $0x18] sm:$0xff]
      %v778 = vld [vmem:[#allocation2 + $0x20] sm:$0xff]
      %v779 = vld [vmem:[#allocation2 + $0x28] sm:$0xff]
      %v780 = vld [vmem:[#allocation2 + $0x30] sm:$0xff]
      %v781 = vld [vmem:[#allocation2 + $0x38] sm:$0xff]
      %v782 = vld [vmem:[#allocation2 + $0x40] sm:$0xff]
      %v783 = vld [vmem:[#allocation2 + $0x48] sm:$0xff]
      %v784 = vld [vmem:[#allocation2 + $0x50] sm:$0xff]
      %v785 = vld [vmem:[#allocation2 + $0x58] sm:$0xff]
      %v786 = vld [vmem:[#allocation2 + $0x60] sm:$0xff]
      %v787 = vld [vmem:[#allocation2 + $0x68] sm:$0xff]
      %v788 = vld [vmem:[#allocation2 + $0x70] sm:$0xff]
      %v789 = vld [vmem:[#allocation2 + $0x78] sm:$0xff]
      %v790 = vadd.f32 %v774, %v696
      %v791 = vadd.f32 %v775, %v701
      %v792 = vadd.f32 %v776, %v706
      %v793 = vadd.f32 %v777, %v711
      %v794 = vadd.f32 %v778, %v716
      %v795 = vadd.f32 %v779, %v721
      %v796 = vadd.f32 %v780, %v726
      %v797 = vadd.f32 %v781, %v731
      %v798 = vadd.f32 %v782, %v736
      %v799 = vadd.f32 %v783, %v741
      %v800 = vadd.f32 %v784, %v746
      %v801 = vadd.f32 %v785, %v751
      %v802 = vadd.f32 %v786, %v756
      %v803 = vadd.f32 %v787, %v761
      %v804 = vadd.f32 %v788, %v766
      %v805 = vadd.f32 %v789, %v771
      %806 = vst.msk [vmem:[#allocation2] sm:$0xff] %vm526, %v790
      %807 = vst.msk [vmem:[#allocation2 + $0x8] sm:$0xff] %vm526, %v791
      %808 = vst.msk [vmem:[#allocation2 + $0x10] sm:$0xff] %vm526, %v792
      %809 = vst.msk [vmem:[#allocation2 + $0x18] sm:$0xff] %vm526, %v793
      %810 = vst.msk [vmem:[#allocation2 + $0x20] sm:$0xff] %vm526, %v794
      %811 = vst.msk [vmem:[#allocation2 + $0x28] sm:$0xff] %vm526, %v795
      %812 = vst.msk [vmem:[#allocation2 + $0x30] sm:$0xff] %vm526, %v796
      %813 = vst.msk [vmem:[#allocation2 + $0x38] sm:$0xff] %vm526, %v797
      %814 = vst.msk [vmem:[#allocation2 + $0x40] sm:$0xff] %vm526, %v798
      %815 = vst.msk [vmem:[#allocation2 + $0x48] sm:$0xff] %vm526, %v799
      %816 = vst.msk [vmem:[#allocation2 + $0x50] sm:$0xff] %vm526, %v800
      %817 = vst.msk [vmem:[#allocation2 + $0x58] sm:$0xff] %vm526, %v801
      %818 = vst.msk [vmem:[#allocation2 + $0x60] sm:$0xff] %vm526, %v802
      %819 = vst.msk [vmem:[#allocation2 + $0x68] sm:$0xff] %vm526, %v803
      %820 = vst.msk [vmem:[#allocation2 + $0x70] sm:$0xff] %vm526, %v804
      %821 = vst.msk [vmem:[#allocation2 + $0x78] sm:$0xff] %vm526, %v805
      %s822 = scalar_lea.vmem %s276, 8
      %v823 = vld [vmem:[%s822] sm:$0xf]
      %vm824 = vcmask 1045504
      %v825 = vrot.slane %v297, 2
      %v826 = vrot.slane %v298, 2
      %v827 = vsel %vm824, %v825, %v826
      %v828 = vrot.slane %v299, 2
      %v829 = vsel %vm824, %v826, %v828
      %v830 = vrot.slane %v300, 2
      %v831 = vrot.slane %v301, 2
      %v832 = vsel %vm824, %v830, %v831
      %v833 = vrot.slane %v302, 2
      %v834 = vsel %vm824, %v831, %v833
      %v835 = vrot.slane %v303, 2
      %v836 = vrot.slane %v304, 2
      %v837 = vsel %vm824, %v835, %v836
      %v838 = vrot.slane %v305, 2
      %v839 = vsel %vm824, %v836, %v838
      %v840 = vrot.slane %v306, 2
      %v841 = vrot.slane %v307, 2
      %v842 = vsel %vm824, %v840, %v841
      %v843 = vrot.slane %v308, 2
      %v844 = vsel %vm824, %v841, %v843
      %v845 = vrot.slane %v309, 2
      %v846 = vrot.slane %v310, 2
      %v847 = vsel %vm824, %v845, %v846
      %v848 = vrot.slane %v311, 2
      %v849 = vsel %vm824, %v846, %v848
      %v850 = vrot.slane %v312, 2
      %v851 = vrot.slane %v313, 2
      %v852 = vsel %vm824, %v850, %v851
      %v853 = vrot.slane %v314, 2
      %v854 = vsel %vm824, %v851, %v853
      %v855 = vrot.slane %v315, 2
      %v856 = vrot.slane %v316, 2
      %v857 = vsel %vm824, %v855, %v856
      %v858 = vrot.slane %v317, 2
      %v859 = vsel %vm824, %v856, %v858
      %v860 = vrot.slane %v318, 2
      %v861 = vrot.slane %v319, 2
      %v862 = vsel %vm824, %v860, %v861
      %v863 = vrot.slane %v320, 2
      %v864 = vsel %vm824, %v861, %v863
      %v865 = vsel %vm328, %v827, 0
      %v867 = vsel %vm328, %v829, 0
      %v869 = vsel %vm328, %v832, 0
      %v871 = vsel %vm328, %v834, 0
      %v873 = vsel %vm328, %v837, 0
      %v875 = vsel %vm328, %v839, 0
      %v877 = vsel %vm328, %v842, 0
      %v879 = vsel %vm328, %v844, 0
      %v881 = vsel %vm328, %v847, 0
      %v883 = vsel %vm328, %v849, 0
      %v885 = vsel %vm328, %v852, 0
      %v887 = vsel %vm328, %v854, 0
      %v889 = vsel %vm328, %v857, 0
      %v891 = vsel %vm328, %v859, 0
      %v893 = vsel %vm328, %v862, 0
      %v895 = vsel %vm328, %v864, 0
      %v898 = vsel %vm377, %v823, 0
      %900 = vmatprep.subr.mxu0 0.0
      %901 = vmatpush1.msra.mxu0 %v898
      %902 = vmatprep.subr.mxu0 0.0
      %903 = vmatpush1.msra.mxu0 0.0
      %904 = vmatprep.subr.mxu0 0.0
      %905 = vmatpush1.msra.mxu0 0.0
      %906 = vmatprep.subr.mxu0 0.0
      %907 = vmatpush1.msra.mxu0 0.0
      %908 = vmatprep.subr.mxu0 0.0
      %909 = vmatpush1.msra.mxu0 0.0
      %910 = vmatprep.subr.mxu0 0.0
      %911 = vmatpush1.msra.mxu0 0.0
      %912 = vmatprep.subr.mxu0 0.0
      %913 = vmatpush1.msra.mxu0 0.0
      %914 = vmatprep.subr.mxu0 0.0
      %915 = vmatpush1.msra.mxu0 0.0
      %916 = vmatprep.subr.mxu0 0.0
      %917 = vmatpush1.msra.mxu0 0.0
      %918 = vmatprep.subr.mxu0 0.0
      %919 = vmatpush1.msra.mxu0 0.0
      %920 = vmatprep.subr.mxu0 0.0
      %921 = vmatpush1.msra.mxu0 0.0
      %922 = vmatprep.subr.mxu0 0.0
      %923 = vmatpush1.msra.mxu0 0.0
      %924 = vmatprep.subr.mxu0 0.0
      %925 = vmatpush1.msra.mxu0 0.0
      %926 = vmatprep.subr.mxu0 0.0
      %927 = vmatpush1.msra.mxu0 0.0
      %928 = vmatprep.subr.mxu0 0.0
      %929 = vmatpush1.msra.mxu0 0.0
      %930 = vmatprep.subr.mxu0 0.0
      %931 = vmatpush1.msra.mxu0 0.0
      %932 = vmatprep.subr.mxu0 0.0
      %933 = vmatpush1.msra.mxu0 0.0
      %934 = vmatprep.subr.mxu0 0.0
      %935 = vmatpush1.msra.mxu0 0.0
      %936 = vmatprep.subr.mxu0 0.0
      %937 = vmatpush1.msra.mxu0 0.0
      %938 = vmatprep.subr.mxu0 0.0
      %939 = vmatpush1.msra.mxu0 0.0
      %940 = vmatprep.subr.mxu0 0.0
      %941 = vmatpush1.msra.mxu0 0.0
      %942 = vmatprep.subr.mxu0 0.0
      %943 = vmatpush1.msra.mxu0 0.0
      %944 = vmatprep.subr.mxu0 0.0
      %945 = vmatpush1.msra.mxu0 0.0
      %946 = vmatprep.subr.mxu0 0.0
      %947 = vmatpush1.msra.mxu0 0.0
      %948 = vmatprep.subr.mxu0 0.0
      %949 = vmatpush1.msra.mxu0 0.0
      %950 = vmatprep.subr.mxu0 0.0
      %951 = vmatpush1.msra.mxu0 0.0
      %952 = vmatprep.subr.mxu0 0.0
      %953 = vmatpush1.msra.mxu0 0.0
      %954 = vmatprep.subr.mxu0 0.0
      %955 = vmatpush1.msra.mxu0 0.0
      %956 = vmatprep.subr.mxu0 0.0
      %957 = vmatpush1.msra.mxu0 0.0
      %958 = vmatprep.subr.mxu0 0.0
      %959 = vmatpush1.msra.mxu0 0.0
      %960 = vmatprep.subr.mxu0 0.0
      %961 = vmatpush1.msra.mxu0 0.0
      %962 = vmatprep.subr.mxu0 0.0
      %963 = vmatpush1.msra.mxu0 0.0
      %964 = vmatprep.mubr.f32.mxu0 0.0
      %965 = vmatmul.mubr.f32.gmra.mrb[0].mxu0 %v865
      %v966 = vpop.f32.mrb[0].mxu0
      %v967 = vadd.f32 0.0, %v966
      %v968 = vpop.f32.mrb[0].mxu0
      %969 = vmatprep.mubr.f32.mxu0 0.0
      %970 = vmatmul.mubr.f32.gmra.mrb[0].mxu0 %v867
      %v971 = vpop.f32.mrb[0].mxu0
      %v972 = vadd.f32 0.0, %v971
      %v973 = vpop.f32.mrb[0].mxu0
      %974 = vmatprep.mubr.f32.mxu0 0.0
      %975 = vmatmul.mubr.f32.gmra.mrb[0].mxu0 %v869
      %v976 = vpop.f32.mrb[0].mxu0
      %v977 = vadd.f32 0.0, %v976
      %v978 = vpop.f32.mrb[0].mxu0
      %979 = vmatprep.mubr.f32.mxu0 0.0
      %980 = vmatmul.mubr.f32.gmra.mrb[0].mxu0 %v871
      %v981 = vpop.f32.mrb[0].mxu0
      %v982 = vadd.f32 0.0, %v981
      %v983 = vpop.f32.mrb[0].mxu0
      %984 = vmatprep.mubr.f32.mxu0 0.0
      %985 = vmatmul.mubr.f32.gmra.mrb[0].mxu0 %v873
      %v986 = vpop.f32.mrb[0].mxu0
      %v987 = vadd.f32 0.0, %v986
      %v988 = vpop.f32.mrb[0].mxu0
      %989 = vmatprep.mubr.f32.mxu0 0.0
      %990 = vmatmul.mubr.f32.gmra.mrb[0].mxu0 %v875
      %v991 = vpop.f32.mrb[0].mxu0
      %v992 = vadd.f32 0.0, %v991
      %v993 = vpop.f32.mrb[0].mxu0
      %994 = vmatprep.mubr.f32.mxu0 0.0
      %995 = vmatmul.mubr.f32.gmra.mrb[0].mxu0 %v877
      %v996 = vpop.f32.mrb[0].mxu0
      %v997 = vadd.f32 0.0, %v996
      %v998 = vpop.f32.mrb[0].mxu0
      %999 = vmatprep.mubr.f32.mxu0 0.0
      %1000 = vmatmul.mubr.f32.gmra.mrb[0].mxu0 %v879
      %v1001 = vpop.f32.mrb[0].mxu0
      %v1002 = vadd.f32 0.0, %v1001
      %v1003 = vpop.f32.mrb[0].mxu0
      %1004 = vmatprep.mubr.f32.mxu0 0.0
      %1005 = vmatmul.mubr.f32.gmra.mrb[0].mxu0 %v881
      %v1006 = vpop.f32.mrb[0].mxu0
      %v1007 = vadd.f32 0.0, %v1006
      %v1008 = vpop.f32.mrb[0].mxu0
      %1009 = vmatprep.mubr.f32.mxu0 0.0
      %1010 = vmatmul.mubr.f32.gmra.mrb[0].mxu0 %v883
      %v1011 = vpop.f32.mrb[0].mxu0
      %v1012 = vadd.f32 0.0, %v1011
      %v1013 = vpop.f32.mrb[0].mxu0
      %1014 = vmatprep.mubr.f32.mxu0 0.0
      %1015 = vmatmul.mubr.f32.gmra.mrb[0].mxu0 %v885
      %v1016 = vpop.f32.mrb[0].mxu0
      %v1017 = vadd.f32 0.0, %v1016
      %v1018 = vpop.f32.mrb[0].mxu0
      %1019 = vmatprep.mubr.f32.mxu0 0.0
      %1020 = vmatmul.mubr.f32.gmra.mrb[0].mxu0 %v887
      %v1021 = vpop.f32.mrb[0].mxu0
      %v1022 = vadd.f32 0.0, %v1021
      %v1023 = vpop.f32.mrb[0].mxu0
      %1024 = vmatprep.mubr.f32.mxu0 0.0
      %1025 = vmatmul.mubr.f32.gmra.mrb[0].mxu0 %v889
      %v1026 = vpop.f32.mrb[0].mxu0
      %v1027 = vadd.f32 0.0, %v1026
      %v1028 = vpop.f32.mrb[0].mxu0
      %1029 = vmatprep.mubr.f32.mxu0 0.0
      %1030 = vmatmul.mubr.f32.gmra.mrb[0].mxu0 %v891
      %v1031 = vpop.f32.mrb[0].mxu0
      %v1032 = vadd.f32 0.0, %v1031
      %v1033 = vpop.f32.mrb[0].mxu0
      %1034 = vmatprep.mubr.f32.mxu0 0.0
      %1035 = vmatmul.mubr.f32.gmra.mrb[0].mxu0 %v893
      %v1036 = vpop.f32.mrb[0].mxu0
      %v1037 = vadd.f32 0.0, %v1036
      %v1038 = vpop.f32.mrb[0].mxu0
      %1039 = vmatprep.mubr.f32.mxu0 0.0
      %1040 = vmatmul.mubr.f32.gmra.mrb[0].mxu0 %v895
      %v1041 = vpop.f32.mrb[0].mxu0
      %v1042 = vadd.f32 0.0, %v1041
      %v1043 = vpop.f32.mrb[0].mxu0
      %1044 = vdwg.mxu0
      %v1045 = vld [vmem:[#allocation2] sm:$0xff]
      %v1046 = vld [vmem:[#allocation2 + $0x8] sm:$0xff]
      %v1047 = vld [vmem:[#allocation2 + $0x10] sm:$0xff]
      %v1048 = vld [vmem:[#allocation2 + $0x18] sm:$0xff]
      %v1049 = vld [vmem:[#allocation2 + $0x20] sm:$0xff]
      %v1050 = vld [vmem:[#allocation2 + $0x28] sm:$0xff]
      %v1051 = vld [vmem:[#allocation2 + $0x30] sm:$0xff]
      %v1052 = vld [vmem:[#allocation2 + $0x38] sm:$0xff]
      %v1053 = vld [vmem:[#allocation2 + $0x40] sm:$0xff]
      %v1054 = vld [vmem:[#allocation2 + $0x48] sm:$0xff]
      %v1055 = vld [vmem:[#allocation2 + $0x50] sm:$0xff]
      %v1056 = vld [vmem:[#allocation2 + $0x58] sm:$0xff]
      %v1057 = vld [vmem:[#allocation2 + $0x60] sm:$0xff]
      %v1058 = vld [vmem:[#allocation2 + $0x68] sm:$0xff]
      %v1059 = vld [vmem:[#allocation2 + $0x70] sm:$0xff]
      %v1060 = vld [vmem:[#allocation2 + $0x78] sm:$0xff]
      %v1061 = vadd.f32 %v1045, %v967
      %v1062 = vadd.f32 %v1046, %v972
      %v1063 = vadd.f32 %v1047, %v977
      %v1064 = vadd.f32 %v1048, %v982
      %v1065 = vadd.f32 %v1049, %v987
      %v1066 = vadd.f32 %v1050, %v992
      %v1067 = vadd.f32 %v1051, %v997
      %v1068 = vadd.f32 %v1052, %v1002
      %v1069 = vadd.f32 %v1053, %v1007
      %v1070 = vadd.f32 %v1054, %v1012
      %v1071 = vadd.f32 %v1055, %v1017
      %v1072 = vadd.f32 %v1056, %v1022
      %v1073 = vadd.f32 %v1057, %v1027
      %v1074 = vadd.f32 %v1058, %v1032
      %v1075 = vadd.f32 %v1059, %v1037
      %v1076 = vadd.f32 %v1060, %v1042
      %1077 = vst.msk [vmem:[#allocation2] sm:$0xff] %vm526, %v1061
      %1078 = vst.msk [vmem:[#allocation2 + $0x8] sm:$0xff] %vm526, %v1062
      %1079 = vst.msk [vmem:[#allocation2 + $0x10] sm:$0xff] %vm526, %v1063
      %1080 = vst.msk [vmem:[#allocation2 + $0x18] sm:$0xff] %vm526, %v1064
      %1081 = vst.msk [vmem:[#allocation2 + $0x20] sm:$0xff] %vm526, %v1065
      %1082 = vst.msk [vmem:[#allocation2 + $0x28] sm:$0xff] %vm526, %v1066
      %1083 = vst.msk [vmem:[#allocation2 + $0x30] sm:$0xff] %vm526, %v1067
      %1084 = vst.msk [vmem:[#allocation2 + $0x38] sm:$0xff] %vm526, %v1068
      %1085 = vst.msk [vmem:[#allocation2 + $0x40] sm:$0xff] %vm526, %v1069
      %1086 = vst.msk [vmem:[#allocation2 + $0x48] sm:$0xff] %vm526, %v1070
      %1087 = vst.msk [vmem:[#allocation2 + $0x50] sm:$0xff] %vm526, %v1071
      %1088 = vst.msk [vmem:[#allocation2 + $0x58] sm:$0xff] %vm526, %v1072
      %1089 = vst.msk [vmem:[#allocation2 + $0x60] sm:$0xff] %vm526, %v1073
      %1090 = vst.msk [vmem:[#allocation2 + $0x68] sm:$0xff] %vm526, %v1074
      %1091 = vst.msk [vmem:[#allocation2 + $0x70] sm:$0xff] %vm526, %v1075
      %1092 = vst.msk [vmem:[#allocation2 + $0x78] sm:$0xff] %vm526, %v1076
      %s1093 = scalar_lea.vmem %s276, 12
      %v1094 = vld [vmem:[%s1093] sm:$0xf]
      %v1096 = vsel %vm328, %v321, 0
      %v1099 = vsel %vm328, %v322, 0
      %v1102 = vsel %vm377, %v1094, 0
      %1104 = vmatprep.subr.mxu0 0.0
      %1105 = vmatpush1.msra.mxu0 %v1102
      %1106 = vmatprep.subr.mxu0 0.0
      %1107 = vmatpush1.msra.mxu0 0.0
      %1108 = vmatprep.subr.mxu0 0.0
      %1109 = vmatpush1.msra.mxu0 0.0
      %1110 = vmatprep.subr.mxu0 0.0
      %1111 = vmatpush1.msra.mxu0 0.0
      %1112 = vmatprep.subr.mxu0 0.0
      %1113 = vmatpush1.msra.mxu0 0.0
      %1114 = vmatprep.subr.mxu0 0.0
      %1115 = vmatpush1.msra.mxu0 0.0
      %1116 = vmatprep.subr.mxu0 0.0
      %1117 = vmatpush1.msra.mxu0 0.0
      %1118 = vmatprep.subr.mxu0 0.0
      %1119 = vmatpush1.msra.mxu0 0.0
      %1120 = vmatprep.subr.mxu0 0.0
      %1121 = vmatpush1.msra.mxu0 0.0
      %1122 = vmatprep.subr.mxu0 0.0
      %1123 = vmatpush1.msra.mxu0 0.0
      %1124 = vmatprep.subr.mxu0 0.0
      %1125 = vmatpush1.msra.mxu0 0.0
      %1126 = vmatprep.subr.mxu0 0.0
      %1127 = vmatpush1.msra.mxu0 0.0
      %1128 = vmatprep.subr.mxu0 0.0
      %1129 = vmatpush1.msra.mxu0 0.0
      %1130 = vmatprep.subr.mxu0 0.0
      %1131 = vmatpush1.msra.mxu0 0.0
      %1132 = vmatprep.subr.mxu0 0.0
      %1133 = vmatpush1.msra.mxu0 0.0
      %1134 = vmatprep.subr.mxu0 0.0
      %1135 = vmatpush1.msra.mxu0 0.0
      %1136 = vmatprep.subr.mxu0 0.0
      %1137 = vmatpush1.msra.mxu0 0.0
      %1138 = vmatprep.subr.mxu0 0.0
      %1139 = vmatpush1.msra.mxu0 0.0
      %1140 = vmatprep.subr.mxu0 0.0
      %1141 = vmatpush1.msra.mxu0 0.0
      %1142 = vmatprep.subr.mxu0 0.0
      %1143 = vmatpush1.msra.mxu0 0.0
      %1144 = vmatprep.subr.mxu0 0.0
      %1145 = vmatpush1.msra.mxu0 0.0
      %1146 = vmatprep.subr.mxu0 0.0
      %1147 = vmatpush1.msra.mxu0 0.0
      %1148 = vmatprep.subr.mxu0 0.0
      %1149 = vmatpush1.msra.mxu0 0.0
      %1150 = vmatprep.subr.mxu0 0.0
      %1151 = vmatpush1.msra.mxu0 0.0
      %1152 = vmatprep.subr.mxu0 0.0
      %1153 = vmatpush1.msra.mxu0 0.0
      %1154 = vmatprep.subr.mxu0 0.0
      %1155 = vmatpush1.msra.mxu0 0.0
      %1156 = vmatprep.subr.mxu0 0.0
      %1157 = vmatpush1.msra.mxu0 0.0
      %1158 = vmatprep.subr.mxu0 0.0
      %1159 = vmatpush1.msra.mxu0 0.0
      %1160 = vmatprep.subr.mxu0 0.0
      %1161 = vmatpush1.msra.mxu0 0.0
      %1162 = vmatprep.subr.mxu0 0.0
      %1163 = vmatpush1.msra.mxu0 0.0
      %1164 = vmatprep.subr.mxu0 0.0
      %1165 = vmatpush1.msra.mxu0 0.0
      %1166 = vmatprep.subr.mxu0 0.0
      %1167 = vmatpush1.msra.mxu0 0.0
      %1168 = vmatprep.mubr.f32.mxu0 0.0
      %1169 = vmatmul.mubr.f32.gmra.mrb[0].mxu0 %v336
      %v1170 = vpop.f32.mrb[0].mxu0
      %v1171 = vadd.f32 0.0, %v1170
      %v1172 = vpop.f32.mrb[0].mxu0
      %1173 = vmatprep.mubr.f32.mxu0 0.0
      %1174 = vmatmul.mubr.f32.gmra.mrb[0].mxu0 %v339
      %v1175 = vpop.f32.mrb[0].mxu0
      %v1176 = vadd.f32 0.0, %v1175
      %v1177 = vpop.f32.mrb[0].mxu0
      %1178 = vmatprep.mubr.f32.mxu0 0.0
      %1179 = vmatmul.mubr.f32.gmra.mrb[0].mxu0 %v342
      %v1180 = vpop.f32.mrb[0].mxu0
      %v1181 = vadd.f32 0.0, %v1180
      %v1182 = vpop.f32.mrb[0].mxu0
      %1183 = vmatprep.mubr.f32.mxu0 0.0
      %1184 = vmatmul.mubr.f32.gmra.mrb[0].mxu0 %v345
      %v1185 = vpop.f32.mrb[0].mxu0
      %v1186 = vadd.f32 0.0, %v1185
      %v1187 = vpop.f32.mrb[0].mxu0
      %1188 = vmatprep.mubr.f32.mxu0 0.0
      %1189 = vmatmul.mubr.f32.gmra.mrb[0].mxu0 %v348
      %v1190 = vpop.f32.mrb[0].mxu0
      %v1191 = vadd.f32 0.0, %v1190
      %v1192 = vpop.f32.mrb[0].mxu0
      %1193 = vmatprep.mubr.f32.mxu0 0.0
      %1194 = vmatmul.mubr.f32.gmra.mrb[0].mxu0 %v351
      %v1195 = vpop.f32.mrb[0].mxu0
      %v1196 = vadd.f32 0.0, %v1195
      %v1197 = vpop.f32.mrb[0].mxu0
      %1198 = vmatprep.mubr.f32.mxu0 0.0
      %1199 = vmatmul.mubr.f32.gmra.mrb[0].mxu0 %v354
      %v1200 = vpop.f32.mrb[0].mxu0
      %v1201 = vadd.f32 0.0, %v1200
      %v1202 = vpop.f32.mrb[0].mxu0
      %1203 = vmatprep.mubr.f32.mxu0 0.0
      %1204 = vmatmul.mubr.f32.gmra.mrb[0].mxu0 %v357
      %v1205 = vpop.f32.mrb[0].mxu0
      %v1206 = vadd.f32 0.0, %v1205
      %v1207 = vpop.f32.mrb[0].mxu0
      %1208 = vmatprep.mubr.f32.mxu0 0.0
      %1209 = vmatmul.mubr.f32.gmra.mrb[0].mxu0 %v360
      %v1210 = vpop.f32.mrb[0].mxu0
      %v1211 = vadd.f32 0.0, %v1210
      %v1212 = vpop.f32.mrb[0].mxu0
      %1213 = vmatprep.mubr.f32.mxu0 0.0
      %1214 = vmatmul.mubr.f32.gmra.mrb[0].mxu0 %v363
      %v1215 = vpop.f32.mrb[0].mxu0
      %v1216 = vadd.f32 0.0, %v1215
      %v1217 = vpop.f32.mrb[0].mxu0
      %1218 = vmatprep.mubr.f32.mxu0 0.0
      %1219 = vmatmul.mubr.f32.gmra.mrb[0].mxu0 %v366
      %v1220 = vpop.f32.mrb[0].mxu0
      %v1221 = vadd.f32 0.0, %v1220
      %v1222 = vpop.f32.mrb[0].mxu0
      %1223 = vmatprep.mubr.f32.mxu0 0.0
      %1224 = vmatmul.mubr.f32.gmra.mrb[0].mxu0 %v369
      %v1225 = vpop.f32.mrb[0].mxu0
      %v1226 = vadd.f32 0.0, %v1225
      %v1227 = vpop.f32.mrb[0].mxu0
      %1228 = vmatprep.mubr.f32.mxu0 0.0
      %1229 = vmatmul.mubr.f32.gmra.mrb[0].mxu0 %v372
      %v1230 = vpop.f32.mrb[0].mxu0
      %v1231 = vadd.f32 0.0, %v1230
      %v1232 = vpop.f32.mrb[0].mxu0
      %1233 = vmatprep.mubr.f32.mxu0 0.0
      %1234 = vmatmul.mubr.f32.gmra.mrb[0].mxu0 %v375
      %v1235 = vpop.f32.mrb[0].mxu0
      %v1236 = vadd.f32 0.0, %v1235
      %v1237 = vpop.f32.mrb[0].mxu0
      %1238 = vmatprep.mubr.f32.mxu0 0.0
      %1239 = vmatmul.mubr.f32.gmra.mrb[0].mxu0 %v1096
      %v1240 = vpop.f32.mrb[0].mxu0
      %v1241 = vadd.f32 0.0, %v1240
      %v1242 = vpop.f32.mrb[0].mxu0
      %1243 = vmatprep.mubr.f32.mxu0 0.0
      %1244 = vmatmul.mubr.f32.gmra.mrb[0].mxu0 %v1099
      %v1245 = vpop.f32.mrb[0].mxu0
      %v1246 = vadd.f32 0.0, %v1245
      %v1247 = vpop.f32.mrb[0].mxu0
      %1248 = vdwg.mxu0
      %v1249 = vld [vmem:[#allocation2] sm:$0xff]
      %v1250 = vld [vmem:[#allocation2 + $0x8] sm:$0xff]
      %v1251 = vld [vmem:[#allocation2 + $0x10] sm:$0xff]
      %v1252 = vld [vmem:[#allocation2 + $0x18] sm:$0xff]
      %v1253 = vld [vmem:[#allocation2 + $0x20] sm:$0xff]
      %v1254 = vld [vmem:[#allocation2 + $0x28] sm:$0xff]
      %v1255 = vld [vmem:[#allocation2 + $0x30] sm:$0xff]
      %v1256 = vld [vmem:[#allocation2 + $0x38] sm:$0xff]
      %v1257 = vld [vmem:[#allocation2 + $0x40] sm:$0xff]
      %v1258 = vld [vmem:[#allocation2 + $0x48] sm:$0xff]
      %v1259 = vld [vmem:[#allocation2 + $0x50] sm:$0xff]
      %v1260 = vld [vmem:[#allocation2 + $0x58] sm:$0xff]
      %v1261 = vld [vmem:[#allocation2 + $0x60] sm:$0xff]
      %v1262 = vld [vmem:[#allocation2 + $0x68] sm:$0xff]
      %v1263 = vld [vmem:[#allocation2 + $0x70] sm:$0xff]
      %v1264 = vld [vmem:[#allocation2 + $0x78] sm:$0xff]
      %v1265 = vadd.f32 %v1249, %v1171
      %v1266 = vadd.f32 %v1250, %v1176
      %v1267 = vadd.f32 %v1251, %v1181
      %v1268 = vadd.f32 %v1252, %v1186
      %v1269 = vadd.f32 %v1253, %v1191
      %v1270 = vadd.f32 %v1254, %v1196
      %v1271 = vadd.f32 %v1255, %v1201
      %v1272 = vadd.f32 %v1256, %v1206
      %v1273 = vadd.f32 %v1257, %v1211
      %v1274 = vadd.f32 %v1258, %v1216
      %v1275 = vadd.f32 %v1259, %v1221
      %v1276 = vadd.f32 %v1260, %v1226
      %v1277 = vadd.f32 %v1261, %v1231
      %v1278 = vadd.f32 %v1262, %v1236
      %v1279 = vadd.f32 %v1263, %v1241
      %v1280 = vadd.f32 %v1264, %v1246
      %1281 = vst.msk [vmem:[#allocation2] sm:$0xff] %vm526, %v1265
      %1282 = vst.msk [vmem:[#allocation2 + $0x8] sm:$0xff] %vm526, %v1266
      %1283 = vst.msk [vmem:[#allocation2 + $0x10] sm:$0xff] %vm526, %v1267
      %1284 = vst.msk [vmem:[#allocation2 + $0x18] sm:$0xff] %vm526, %v1268
      %1285 = vst.msk [vmem:[#allocation2 + $0x20] sm:$0xff] %vm526, %v1269
      %1286 = vst.msk [vmem:[#allocation2 + $0x28] sm:$0xff] %vm526, %v1270
      %1287 = vst.msk [vmem:[#allocation2 + $0x30] sm:$0xff] %vm526, %v1271
      %1288 = vst.msk [vmem:[#allocation2 + $0x38] sm:$0xff] %vm526, %v1272
      %1289 = vst.msk [vmem:[#allocation2 + $0x40] sm:$0xff] %vm526, %v1273
      %1290 = vst.msk [vmem:[#allocation2 + $0x48] sm:$0xff] %vm526, %v1274
      %1291 = vst.msk [vmem:[#allocation2 + $0x50] sm:$0xff] %vm526, %v1275
      %1292 = vst.msk [vmem:[#allocation2 + $0x58] sm:$0xff] %vm526, %v1276
      %1293 = vst.msk [vmem:[#allocation2 + $0x60] sm:$0xff] %vm526, %v1277
      %1294 = vst.msk [vmem:[#allocation2 + $0x68] sm:$0xff] %vm526, %v1278
      %1295 = vst.msk [vmem:[#allocation2 + $0x70] sm:$0xff] %vm526, %v1279
      %1296 = vst.msk [vmem:[#allocation2 + $0x78] sm:$0xff] %vm526, %v1280
      %s1297 = scalar_lea.vmem %s276, 16
      %v1298 = vld [vmem:[%s1297] sm:$0xf]
      %v1300 = vrot.slane %v321, 1
      %v1301 = vrot.slane %v322, 1
      %v1302 = vsel %vm553, %v1300, %v1301
      %v1303 = vrot.slane %v323, 1
      %v1304 = vsel %vm553, %v1301, %v1303
      %v1305 = vsel %vm328, %v1302, 0
      %v1307 = vsel %vm328, %v1304, 0
      %v1310 = vsel %vm377, %v1298, 0
      %1312 = vmatprep.subr.mxu0 0.0
      %1313 = vmatpush1.msra.mxu0 %v1310
      %1314 = vmatprep.subr.mxu0 0.0
      %1315 = vmatpush1.msra.mxu0 0.0
      %1316 = vmatprep.subr.mxu0 0.0
      %1317 = vmatpush1.msra.mxu0 0.0
      %1318 = vmatprep.subr.mxu0 0.0
      %1319 = vmatpush1.msra.mxu0 0.0
      %1320 = vmatprep.subr.mxu0 0.0
      %1321 = vmatpush1.msra.mxu0 0.0
      %1322 = vmatprep.subr.mxu0 0.0
      %1323 = vmatpush1.msra.mxu0 0.0
      %1324 = vmatprep.subr.mxu0 0.0
      %1325 = vmatpush1.msra.mxu0 0.0
      %1326 = vmatprep.subr.mxu0 0.0
      %1327 = vmatpush1.msra.mxu0 0.0
      %1328 = vmatprep.subr.mxu0 0.0
      %1329 = vmatpush1.msra.mxu0 0.0
      %1330 = vmatprep.subr.mxu0 0.0
      %1331 = vmatpush1.msra.mxu0 0.0
      %1332 = vmatprep.subr.mxu0 0.0
      %1333 = vmatpush1.msra.mxu0 0.0
      %1334 = vmatprep.subr.mxu0 0.0
      %1335 = vmatpush1.msra.mxu0 0.0
      %1336 = vmatprep.subr.mxu0 0.0
      %1337 = vmatpush1.msra.mxu0 0.0
      %1338 = vmatprep.subr.mxu0 0.0
      %1339 = vmatpush1.msra.mxu0 0.0
      %1340 = vmatprep.subr.mxu0 0.0
      %1341 = vmatpush1.msra.mxu0 0.0
      %1342 = vmatprep.subr.mxu0 0.0
      %1343 = vmatpush1.msra.mxu0 0.0
      %1344 = vmatprep.subr.mxu0 0.0
      %1345 = vmatpush1.msra.mxu0 0.0
      %1346 = vmatprep.subr.mxu0 0.0
      %1347 = vmatpush1.msra.mxu0 0.0
      %1348 = vmatprep.subr.mxu0 0.0
      %1349 = vmatpush1.msra.mxu0 0.0
      %1350 = vmatprep.subr.mxu0 0.0
      %1351 = vmatpush1.msra.mxu0 0.0
      %1352 = vmatprep.subr.mxu0 0.0
      %1353 = vmatpush1.msra.mxu0 0.0
      %1354 = vmatprep.subr.mxu0 0.0
      %1355 = vmatpush1.msra.mxu0 0.0
      %1356 = vmatprep.subr.mxu0 0.0
      %1357 = vmatpush1.msra.mxu0 0.0
      %1358 = vmatprep.subr.mxu0 0.0
      %1359 = vmatpush1.msra.mxu0 0.0
      %1360 = vmatprep.subr.mxu0 0.0
      %1361 = vmatpush1.msra.mxu0 0.0
      %1362 = vmatprep.subr.mxu0 0.0
      %1363 = vmatpush1.msra.mxu0 0.0
      %1364 = vmatprep.subr.mxu0 0.0
      %1365 = vmatpush1.msra.mxu0 0.0
      %1366 = vmatprep.subr.mxu0 0.0
      %1367 = vmatpush1.msra.mxu0 0.0
      %1368 = vmatprep.subr.mxu0 0.0
      %1369 = vmatpush1.msra.mxu0 0.0
      %1370 = vmatprep.subr.mxu0 0.0
      %1371 = vmatpush1.msra.mxu0 0.0
      %1372 = vmatprep.subr.mxu0 0.0
      %1373 = vmatpush1.msra.mxu0 0.0
      %1374 = vmatprep.subr.mxu0 0.0
      %1375 = vmatpush1.msra.mxu0 0.0
      %1376 = vmatprep.mubr.f32.mxu0 0.0
      %1377 = vmatmul.mubr.f32.gmra.mrb[0].mxu0 %v598
      %v1378 = vpop.f32.mrb[0].mxu0
      %v1379 = vadd.f32 0.0, %v1378
      %v1380 = vpop.f32.mrb[0].mxu0
      %1381 = vmatprep.mubr.f32.mxu0 0.0
      %1382 = vmatmul.mubr.f32.gmra.mrb[0].mxu0 %v600
      %v1383 = vpop.f32.mrb[0].mxu0
      %v1384 = vadd.f32 0.0, %v1383
      %v1385 = vpop.f32.mrb[0].mxu0
      %1386 = vmatprep.mubr.f32.mxu0 0.0
      %1387 = vmatmul.mubr.f32.gmra.mrb[0].mxu0 %v602
      %v1388 = vpop.f32.mrb[0].mxu0
      %v1389 = vadd.f32 0.0, %v1388
      %v1390 = vpop.f32.mrb[0].mxu0
      %1391 = vmatprep.mubr.f32.mxu0 0.0
      %1392 = vmatmul.mubr.f32.gmra.mrb[0].mxu0 %v604
      %v1393 = vpop.f32.mrb[0].mxu0
      %v1394 = vadd.f32 0.0, %v1393
      %v1395 = vpop.f32.mrb[0].mxu0
      %1396 = vmatprep.mubr.f32.mxu0 0.0
      %1397 = vmatmul.mubr.f32.gmra.mrb[0].mxu0 %v606
      %v1398 = vpop.f32.mrb[0].mxu0
      %v1399 = vadd.f32 0.0, %v1398
      %v1400 = vpop.f32.mrb[0].mxu0
      %1401 = vmatprep.mubr.f32.mxu0 0.0
      %1402 = vmatmul.mubr.f32.gmra.mrb[0].mxu0 %v608
      %v1403 = vpop.f32.mrb[0].mxu0
      %v1404 = vadd.f32 0.0, %v1403
      %v1405 = vpop.f32.mrb[0].mxu0
      %1406 = vmatprep.mubr.f32.mxu0 0.0
      %1407 = vmatmul.mubr.f32.gmra.mrb[0].mxu0 %v610
      %v1408 = vpop.f32.mrb[0].mxu0
      %v1409 = vadd.f32 0.0, %v1408
      %v1410 = vpop.f32.mrb[0].mxu0
      %1411 = vmatprep.mubr.f32.mxu0 0.0
      %1412 = vmatmul.mubr.f32.gmra.mrb[0].mxu0 %v612
      %v1413 = vpop.f32.mrb[0].mxu0
      %v1414 = vadd.f32 0.0, %v1413
      %v1415 = vpop.f32.mrb[0].mxu0
      %1416 = vmatprep.mubr.f32.mxu0 0.0
      %1417 = vmatmul.mubr.f32.gmra.mrb[0].mxu0 %v614
      %v1418 = vpop.f32.mrb[0].mxu0
      %v1419 = vadd.f32 0.0, %v1418
      %v1420 = vpop.f32.mrb[0].mxu0
      %1421 = vmatprep.mubr.f32.mxu0 0.0
      %1422 = vmatmul.mubr.f32.gmra.mrb[0].mxu0 %v616
      %v1423 = vpop.f32.mrb[0].mxu0
      %v1424 = vadd.f32 0.0, %v1423
      %v1425 = vpop.f32.mrb[0].mxu0
      %1426 = vmatprep.mubr.f32.mxu0 0.0
      %1427 = vmatmul.mubr.f32.gmra.mrb[0].mxu0 %v618
      %v1428 = vpop.f32.mrb[0].mxu0
      %v1429 = vadd.f32 0.0, %v1428
      %v1430 = vpop.f32.mrb[0].mxu0
      %1431 = vmatprep.mubr.f32.mxu0 0.0
      %1432 = vmatmul.mubr.f32.gmra.mrb[0].mxu0 %v620
      %v1433 = vpop.f32.mrb[0].mxu0
      %v1434 = vadd.f32 0.0, %v1433
      %v1435 = vpop.f32.mrb[0].mxu0
      %1436 = vmatprep.mubr.f32.mxu0 0.0
      %1437 = vmatmul.mubr.f32.gmra.mrb[0].mxu0 %v622
      %v1438 = vpop.f32.mrb[0].mxu0
      %v1439 = vadd.f32 0.0, %v1438
      %v1440 = vpop.f32.mrb[0].mxu0
      %1441 = vmatprep.mubr.f32.mxu0 0.0
      %1442 = vmatmul.mubr.f32.gmra.mrb[0].mxu0 %v624
      %v1443 = vpop.f32.mrb[0].mxu0
      %v1444 = vadd.f32 0.0, %v1443
      %v1445 = vpop.f32.mrb[0].mxu0
      %1446 = vmatprep.mubr.f32.mxu0 0.0
      %1447 = vmatmul.mubr.f32.gmra.mrb[0].mxu0 %v1305
      %v1448 = vpop.f32.mrb[0].mxu0
      %v1449 = vadd.f32 0.0, %v1448
      %v1450 = vpop.f32.mrb[0].mxu0
      %1451 = vmatprep.mubr.f32.mxu0 0.0
      %1452 = vmatmul.mubr.f32.gmra.mrb[0].mxu0 %v1307
      %v1453 = vpop.f32.mrb[0].mxu0
      %v1454 = vadd.f32 0.0, %v1453
      %v1455 = vpop.f32.mrb[0].mxu0
      %1456 = vdwg.mxu0
      %v1457 = vld [vmem:[#allocation2] sm:$0xff]
      %v1458 = vld [vmem:[#allocation2 + $0x8] sm:$0xff]
      %v1459 = vld [vmem:[#allocation2 + $0x10] sm:$0xff]
      %v1460 = vld [vmem:[#allocation2 + $0x18] sm:$0xff]
      %v1461 = vld [vmem:[#allocation2 + $0x20] sm:$0xff]
      %v1462 = vld [vmem:[#allocation2 + $0x28] sm:$0xff]
      %v1463 = vld [vmem:[#allocation2 + $0x30] sm:$0xff]
      %v1464 = vld [vmem:[#allocation2 + $0x38] sm:$0xff]
      %v1465 = vld [vmem:[#allocation2 + $0x40] sm:$0xff]
      %v1466 = vld [vmem:[#allocation2 + $0x48] sm:$0xff]
      %v1467 = vld [vmem:[#allocation2 + $0x50] sm:$0xff]
      %v1468 = vld [vmem:[#allocation2 + $0x58] sm:$0xff]
      %v1469 = vld [vmem:[#allocation2 + $0x60] sm:$0xff]
      %v1470 = vld [vmem:[#allocation2 + $0x68] sm:$0xff]
      %v1471 = vld [vmem:[#allocation2 + $0x70] sm:$0xff]
      %v1472 = vld [vmem:[#allocation2 + $0x78] sm:$0xff]
      %v1473 = vadd.f32 %v1457, %v1379
      %v1474 = vadd.f32 %v1458, %v1384
      %v1475 = vadd.f32 %v1459, %v1389
      %v1476 = vadd.f32 %v1460, %v1394
      %v1477 = vadd.f32 %v1461, %v1399
      %v1478 = vadd.f32 %v1462, %v1404
      %v1479 = vadd.f32 %v1463, %v1409
      %v1480 = vadd.f32 %v1464, %v1414
      %v1481 = vadd.f32 %v1465, %v1419
      %v1482 = vadd.f32 %v1466, %v1424
      %v1483 = vadd.f32 %v1467, %v1429
      %v1484 = vadd.f32 %v1468, %v1434
      %v1485 = vadd.f32 %v1469, %v1439
      %v1486 = vadd.f32 %v1470, %v1444
      %v1487 = vadd.f32 %v1471, %v1449
      %v1488 = vadd.f32 %v1472, %v1454
      %1489 = vst.msk [vmem:[#allocation2] sm:$0xff] %vm526, %v1473
      %1490 = vst.msk [vmem:[#allocation2 + $0x8] sm:$0xff] %vm526, %v1474
      %1491 = vst.msk [vmem:[#allocation2 + $0x10] sm:$0xff] %vm526, %v1475
      %1492 = vst.msk [vmem:[#allocation2 + $0x18] sm:$0xff] %vm526, %v1476
      %1493 = vst.msk [vmem:[#allocation2 + $0x20] sm:$0xff] %vm526, %v1477
      %1494 = vst.msk [vmem:[#allocation2 + $0x28] sm:$0xff] %vm526, %v1478
      %1495 = vst.msk [vmem:[#allocation2 + $0x30] sm:$0xff] %vm526, %v1479
      %1496 = vst.msk [vmem:[#allocation2 + $0x38] sm:$0xff] %vm526, %v1480
      %1497 = vst.msk [vmem:[#allocation2 + $0x40] sm:$0xff] %vm526, %v1481
      %1498 = vst.msk [vmem:[#allocation2 + $0x48] sm:$0xff] %vm526, %v1482
      %1499 = vst.msk [vmem:[#allocation2 + $0x50] sm:$0xff] %vm526, %v1483
      %1500 = vst.msk [vmem:[#allocation2 + $0x58] sm:$0xff] %vm526, %v1484
      %1501 = vst.msk [vmem:[#allocation2 + $0x60] sm:$0xff] %vm526, %v1485
      %1502 = vst.msk [vmem:[#allocation2 + $0x68] sm:$0xff] %vm526, %v1486
      %1503 = vst.msk [vmem:[#allocation2 + $0x70] sm:$0xff] %vm526, %v1487
      %1504 = vst.msk [vmem:[#allocation2 + $0x78] sm:$0xff] %vm526, %v1488
      %s1505 = scalar_lea.vmem %s276, 20
      %v1506 = vld [vmem:[%s1505] sm:$0xf]
      %v1507 = vrot.slane %v321, 2
      %v1508 = vrot.slane %v322, 2
      %v1509 = vsel %vm824, %v1507, %v1508
      %v1510 = vrot.slane %v323, 2
      %v1511 = vsel %vm824, %v1508, %v1510
      %v1512 = vsel %vm328, %v1509, 0
      %v1514 = vsel %vm328, %v1511, 0
      %v1517 = vsel %vm377, %v1506, 0
      %1519 = vmatprep.subr.mxu0 0.0
      %1520 = vmatpush1.msra.mxu0 %v1517
      %1521 = vmatprep.subr.mxu0 0.0
      %1522 = vmatpush1.msra.mxu0 0.0
      %1523 = vmatprep.subr.mxu0 0.0
      %1524 = vmatpush1.msra.mxu0 0.0
      %1525 = vmatprep.subr.mxu0 0.0
      %1526 = vmatpush1.msra.mxu0 0.0
      %1527 = vmatprep.subr.mxu0 0.0
      %1528 = vmatpush1.msra.mxu0 0.0
      %1529 = vmatprep.subr.mxu0 0.0
      %1530 = vmatpush1.msra.mxu0 0.0
      %1531 = vmatprep.subr.mxu0 0.0
      %1532 = vmatpush1.msra.mxu0 0.0
      %1533 = vmatprep.subr.mxu0 0.0
      %1534 = vmatpush1.msra.mxu0 0.0
      %1535 = vmatprep.subr.mxu0 0.0
      %1536 = vmatpush1.msra.mxu0 0.0
      %1537 = vmatprep.subr.mxu0 0.0
      %1538 = vmatpush1.msra.mxu0 0.0
      %1539 = vmatprep.subr.mxu0 0.0
      %1540 = vmatpush1.msra.mxu0 0.0
      %1541 = vmatprep.subr.mxu0 0.0
      %1542 = vmatpush1.msra.mxu0 0.0
      %1543 = vmatprep.subr.mxu0 0.0
      %1544 = vmatpush1.msra.mxu0 0.0
      %1545 = vmatprep.subr.mxu0 0.0
      %1546 = vmatpush1.msra.mxu0 0.0
      %1547 = vmatprep.subr.mxu0 0.0
      %1548 = vmatpush1.msra.mxu0 0.0
      %1549 = vmatprep.subr.mxu0 0.0
      %1550 = vmatpush1.msra.mxu0 0.0
      %1551 = vmatprep.subr.mxu0 0.0
      %1552 = vmatpush1.msra.mxu0 0.0
      %1553 = vmatprep.subr.mxu0 0.0
      %1554 = vmatpush1.msra.mxu0 0.0
      %1555 = vmatprep.subr.mxu0 0.0
      %1556 = vmatpush1.msra.mxu0 0.0
      %1557 = vmatprep.subr.mxu0 0.0
      %1558 = vmatpush1.msra.mxu0 0.0
      %1559 = vmatprep.subr.mxu0 0.0
      %1560 = vmatpush1.msra.mxu0 0.0
      %1561 = vmatprep.subr.mxu0 0.0
      %1562 = vmatpush1.msra.mxu0 0.0
      %1563 = vmatprep.subr.mxu0 0.0
      %1564 = vmatpush1.msra.mxu0 0.0
      %1565 = vmatprep.subr.mxu0 0.0
      %1566 = vmatpush1.msra.mxu0 0.0
      %1567 = vmatprep.subr.mxu0 0.0
      %1568 = vmatpush1.msra.mxu0 0.0
      %1569 = vmatprep.subr.mxu0 0.0
      %1570 = vmatpush1.msra.mxu0 0.0
      %1571 = vmatprep.subr.mxu0 0.0
      %1572 = vmatpush1.msra.mxu0 0.0
      %1573 = vmatprep.subr.mxu0 0.0
      %1574 = vmatpush1.msra.mxu0 0.0
      %1575 = vmatprep.subr.mxu0 0.0
      %1576 = vmatpush1.msra.mxu0 0.0
      %1577 = vmatprep.subr.mxu0 0.0
      %1578 = vmatpush1.msra.mxu0 0.0
      %1579 = vmatprep.subr.mxu0 0.0
      %1580 = vmatpush1.msra.mxu0 0.0
      %1581 = vmatprep.subr.mxu0 0.0
      %1582 = vmatpush1.msra.mxu0 0.0
      %1583 = vmatprep.mubr.f32.mxu0 0.0
      %1584 = vmatmul.mubr.f32.gmra.mrb[0].mxu0 %v869
      %v1585 = vpop.f32.mrb[0].mxu0
      %v1586 = vadd.f32 0.0, %v1585
      %v1587 = vpop.f32.mrb[0].mxu0
      %1588 = vmatprep.mubr.f32.mxu0 0.0
      %1589 = vmatmul.mubr.f32.gmra.mrb[0].mxu0 %v871
      %v1590 = vpop.f32.mrb[0].mxu0
      %v1591 = vadd.f32 0.0, %v1590
      %v1592 = vpop.f32.mrb[0].mxu0
      %1593 = vmatprep.mubr.f32.mxu0 0.0
      %1594 = vmatmul.mubr.f32.gmra.mrb[0].mxu0 %v873
      %v1595 = vpop.f32.mrb[0].mxu0
      %v1596 = vadd.f32 0.0, %v1595
      %v1597 = vpop.f32.mrb[0].mxu0
      %1598 = vmatprep.mubr.f32.mxu0 0.0
      %1599 = vmatmul.mubr.f32.gmra.mrb[0].mxu0 %v875
      %v1600 = vpop.f32.mrb[0].mxu0
      %v1601 = vadd.f32 0.0, %v1600
      %v1602 = vpop.f32.mrb[0].mxu0
      %1603 = vmatprep.mubr.f32.mxu0 0.0
      %1604 = vmatmul.mubr.f32.gmra.mrb[0].mxu0 %v877
      %v1605 = vpop.f32.mrb[0].mxu0
      %v1606 = vadd.f32 0.0, %v1605
      %v1607 = vpop.f32.mrb[0].mxu0
      %1608 = vmatprep.mubr.f32.mxu0 0.0
      %1609 = vmatmul.mubr.f32.gmra.mrb[0].mxu0 %v879
      %v1610 = vpop.f32.mrb[0].mxu0
      %v1611 = vadd.f32 0.0, %v1610
      %v1612 = vpop.f32.mrb[0].mxu0
      %1613 = vmatprep.mubr.f32.mxu0 0.0
      %1614 = vmatmul.mubr.f32.gmra.mrb[0].mxu0 %v881
      %v1615 = vpop.f32.mrb[0].mxu0
      %v1616 = vadd.f32 0.0, %v1615
      %v1617 = vpop.f32.mrb[0].mxu0
      %1618 = vmatprep.mubr.f32.mxu0 0.0
      %1619 = vmatmul.mubr.f32.gmra.mrb[0].mxu0 %v883
      %v1620 = vpop.f32.mrb[0].mxu0
      %v1621 = vadd.f32 0.0, %v1620
      %v1622 = vpop.f32.mrb[0].mxu0
      %1623 = vmatprep.mubr.f32.mxu0 0.0
      %1624 = vmatmul.mubr.f32.gmra.mrb[0].mxu0 %v885
      %v1625 = vpop.f32.mrb[0].mxu0
      %v1626 = vadd.f32 0.0, %v1625
      %v1627 = vpop.f32.mrb[0].mxu0
      %1628 = vmatprep.mubr.f32.mxu0 0.0
      %1629 = vmatmul.mubr.f32.gmra.mrb[0].mxu0 %v887
      %v1630 = vpop.f32.mrb[0].mxu0
      %v1631 = vadd.f32 0.0, %v1630
      %v1632 = vpop.f32.mrb[0].mxu0
      %1633 = vmatprep.mubr.f32.mxu0 0.0
      %1634 = vmatmul.mubr.f32.gmra.mrb[0].mxu0 %v889
      %v1635 = vpop.f32.mrb[0].mxu0
      %v1636 = vadd.f32 0.0, %v1635
      %v1637 = vpop.f32.mrb[0].mxu0
      %1638 = vmatprep.mubr.f32.mxu0 0.0
      %1639 = vmatmul.mubr.f32.gmra.mrb[0].mxu0 %v891
      %v1640 = vpop.f32.mrb[0].mxu0
      %v1641 = vadd.f32 0.0, %v1640
      %v1642 = vpop.f32.mrb[0].mxu0
      %1643 = vmatprep.mubr.f32.mxu0 0.0
      %1644 = vmatmul.mubr.f32.gmra.mrb[0].mxu0 %v893
      %v1645 = vpop.f32.mrb[0].mxu0
      %v1646 = vadd.f32 0.0, %v1645
      %v1647 = vpop.f32.mrb[0].mxu0
      %1648 = vmatprep.mubr.f32.mxu0 0.0
      %1649 = vmatmul.mubr.f32.gmra.mrb[0].mxu0 %v895
      %v1650 = vpop.f32.mrb[0].mxu0
      %v1651 = vadd.f32 0.0, %v1650
      %v1652 = vpop.f32.mrb[0].mxu0
      %1653 = vmatprep.mubr.f32.mxu0 0.0
      %1654 = vmatmul.mubr.f32.gmra.mrb[0].mxu0 %v1512
      %v1655 = vpop.f32.mrb[0].mxu0
      %v1656 = vadd.f32 0.0, %v1655
      %v1657 = vpop.f32.mrb[0].mxu0
      %1658 = vmatprep.mubr.f32.mxu0 0.0
      %1659 = vmatmul.mubr.f32.gmra.mrb[0].mxu0 %v1514
      %v1660 = vpop.f32.mrb[0].mxu0
      %v1661 = vadd.f32 0.0, %v1660
      %v1662 = vpop.f32.mrb[0].mxu0
      %1663 = vdwg.mxu0
      %v1664 = vld [vmem:[#allocation2] sm:$0xff]
      %v1665 = vld [vmem:[#allocation2 + $0x8] sm:$0xff]
      %v1666 = vld [vmem:[#allocation2 + $0x10] sm:$0xff]
      %v1667 = vld [vmem:[#allocation2 + $0x18] sm:$0xff]
      %v1668 = vld [vmem:[#allocation2 + $0x20] sm:$0xff]
      %v1669 = vld [vmem:[#allocation2 + $0x28] sm:$0xff]
      %v1670 = vld [vmem:[#allocation2 + $0x30] sm:$0xff]
      %v1671 = vld [vmem:[#allocation2 + $0x38] sm:$0xff]
      %v1672 = vld [vmem:[#allocation2 + $0x40] sm:$0xff]
      %v1673 = vld [vmem:[#allocation2 + $0x48] sm:$0xff]
      %v1674 = vld [vmem:[#allocation2 + $0x50] sm:$0xff]
      %v1675 = vld [vmem:[#allocation2 + $0x58] sm:$0xff]
      %v1676 = vld [vmem:[#allocation2 + $0x60] sm:$0xff]
      %v1677 = vld [vmem:[#allocation2 + $0x68] sm:$0xff]
      %v1678 = vld [vmem:[#allocation2 + $0x70] sm:$0xff]
      %v1679 = vld [vmem:[#allocation2 + $0x78] sm:$0xff]
      %v1680 = vadd.f32 %v1664, %v1586
      %v1681 = vadd.f32 %v1665, %v1591
      %v1682 = vadd.f32 %v1666, %v1596
      %v1683 = vadd.f32 %v1667, %v1601
      %v1684 = vadd.f32 %v1668, %v1606
      %v1685 = vadd.f32 %v1669, %v1611
      %v1686 = vadd.f32 %v1670, %v1616
      %v1687 = vadd.f32 %v1671, %v1621
      %v1688 = vadd.f32 %v1672, %v1626
      %v1689 = vadd.f32 %v1673, %v1631
      %v1690 = vadd.f32 %v1674, %v1636
      %v1691 = vadd.f32 %v1675, %v1641
      %v1692 = vadd.f32 %v1676, %v1646
      %v1693 = vadd.f32 %v1677, %v1651
      %v1694 = vadd.f32 %v1678, %v1656
      %v1695 = vadd.f32 %v1679, %v1661
      %1696 = vst.msk [vmem:[#allocation2] sm:$0xff] %vm526, %v1680
      %1697 = vst.msk [vmem:[#allocation2 + $0x8] sm:$0xff] %vm526, %v1681
      %1698 = vst.msk [vmem:[#allocation2 + $0x10] sm:$0xff] %vm526, %v1682
      %1699 = vst.msk [vmem:[#allocation2 + $0x18] sm:$0xff] %vm526, %v1683
      %1700 = vst.msk [vmem:[#allocation2 + $0x20] sm:$0xff] %vm526, %v1684
      %1701 = vst.msk [vmem:[#allocation2 + $0x28] sm:$0xff] %vm526, %v1685
      %1702 = vst.msk [vmem:[#allocation2 + $0x30] sm:$0xff] %vm526, %v1686
      %1703 = vst.msk [vmem:[#allocation2 + $0x38] sm:$0xff] %vm526, %v1687
      %1704 = vst.msk [vmem:[#allocation2 + $0x40] sm:$0xff] %vm526, %v1688
      %1705 = vst.msk [vmem:[#allocation2 + $0x48] sm:$0xff] %vm526, %v1689
      %1706 = vst.msk [vmem:[#allocation2 + $0x50] sm:$0xff] %vm526, %v1690
      %1707 = vst.msk [vmem:[#allocation2 + $0x58] sm:$0xff] %vm526, %v1691
      %1708 = vst.msk [vmem:[#allocation2 + $0x60] sm:$0xff] %vm526, %v1692
      %1709 = vst.msk [vmem:[#allocation2 + $0x68] sm:$0xff] %vm526, %v1693
      %1710 = vst.msk [vmem:[#allocation2 + $0x70] sm:$0xff] %vm526, %v1694
      %1711 = vst.msk [vmem:[#allocation2 + $0x78] sm:$0xff] %vm526, %v1695
      %s1712 = scalar_lea.vmem %s276, 24
      %v1713 = vld [vmem:[%s1712] sm:$0xf]
      %v1715 = vsel %vm328, %v324, 0
      %v1718 = vsel %vm328, %v325, 0
      %v1721 = vsel %vm377, %v1713, 0
      %1723 = vmatprep.subr.mxu0 0.0
      %1724 = vmatpush1.msra.mxu0 %v1721
      %1725 = vmatprep.subr.mxu0 0.0
      %1726 = vmatpush1.msra.mxu0 0.0
      %1727 = vmatprep.subr.mxu0 0.0
      %1728 = vmatpush1.msra.mxu0 0.0
      %1729 = vmatprep.subr.mxu0 0.0
      %1730 = vmatpush1.msra.mxu0 0.0
      %1731 = vmatprep.subr.mxu0 0.0
      %1732 = vmatpush1.msra.mxu0 0.0
      %1733 = vmatprep.subr.mxu0 0.0
      %1734 = vmatpush1.msra.mxu0 0.0
      %1735 = vmatprep.subr.mxu0 0.0
      %1736 = vmatpush1.msra.mxu0 0.0
      %1737 = vmatprep.subr.mxu0 0.0
      %1738 = vmatpush1.msra.mxu0 0.0
      %1739 = vmatprep.subr.mxu0 0.0
      %1740 = vmatpush1.msra.mxu0 0.0
      %1741 = vmatprep.subr.mxu0 0.0
      %1742 = vmatpush1.msra.mxu0 0.0
      %1743 = vmatprep.subr.mxu0 0.0
      %1744 = vmatpush1.msra.mxu0 0.0
      %1745 = vmatprep.subr.mxu0 0.0
      %1746 = vmatpush1.msra.mxu0 0.0
      %1747 = vmatprep.subr.mxu0 0.0
      %1748 = vmatpush1.msra.mxu0 0.0
      %1749 = vmatprep.subr.mxu0 0.0
      %1750 = vmatpush1.msra.mxu0 0.0
      %1751 = vmatprep.subr.mxu0 0.0
      %1752 = vmatpush1.msra.mxu0 0.0
      %1753 = vmatprep.subr.mxu0 0.0
      %1754 = vmatpush1.msra.mxu0 0.0
      %1755 = vmatprep.subr.mxu0 0.0
      %1756 = vmatpush1.msra.mxu0 0.0
      %1757 = vmatprep.subr.mxu0 0.0
      %1758 = vmatpush1.msra.mxu0 0.0
      %1759 = vmatprep.subr.mxu0 0.0
      %1760 = vmatpush1.msra.mxu0 0.0
      %1761 = vmatprep.subr.mxu0 0.0
      %1762 = vmatpush1.msra.mxu0 0.0
      %1763 = vmatprep.subr.mxu0 0.0
      %1764 = vmatpush1.msra.mxu0 0.0
      %1765 = vmatprep.subr.mxu0 0.0
      %1766 = vmatpush1.msra.mxu0 0.0
      %1767 = vmatprep.subr.mxu0 0.0
      %1768 = vmatpush1.msra.mxu0 0.0
      %1769 = vmatprep.subr.mxu0 0.0
      %1770 = vmatpush1.msra.mxu0 0.0
      %1771 = vmatprep.subr.mxu0 0.0
      %1772 = vmatpush1.msra.mxu0 0.0
      %1773 = vmatprep.subr.mxu0 0.0
      %1774 = vmatpush1.msra.mxu0 0.0
      %1775 = vmatprep.subr.mxu0 0.0
      %1776 = vmatpush1.msra.mxu0 0.0
      %1777 = vmatprep.subr.mxu0 0.0
      %1778 = vmatpush1.msra.mxu0 0.0
      %1779 = vmatprep.subr.mxu0 0.0
      %1780 = vmatpush1.msra.mxu0 0.0
      %1781 = vmatprep.subr.mxu0 0.0
      %1782 = vmatpush1.msra.mxu0 0.0
      %1783 = vmatprep.subr.mxu0 0.0
      %1784 = vmatpush1.msra.mxu0 0.0
      %1785 = vmatprep.subr.mxu0 0.0
      %1786 = vmatpush1.msra.mxu0 0.0
      %1787 = vmatprep.mubr.f32.mxu0 0.0
      %1788 = vmatmul.mubr.f32.gmra.mrb[0].mxu0 %v342
      %v1789 = vpop.f32.mrb[0].mxu0
      %v1790 = vadd.f32 0.0, %v1789
      %v1791 = vpop.f32.mrb[0].mxu0
      %1792 = vmatprep.mubr.f32.mxu0 0.0
      %1793 = vmatmul.mubr.f32.gmra.mrb[0].mxu0 %v345
      %v1794 = vpop.f32.mrb[0].mxu0
      %v1795 = vadd.f32 0.0, %v1794
      %v1796 = vpop.f32.mrb[0].mxu0
      %1797 = vmatprep.mubr.f32.mxu0 0.0
      %1798 = vmatmul.mubr.f32.gmra.mrb[0].mxu0 %v348
      %v1799 = vpop.f32.mrb[0].mxu0
      %v1800 = vadd.f32 0.0, %v1799
      %v1801 = vpop.f32.mrb[0].mxu0
      %1802 = vmatprep.mubr.f32.mxu0 0.0
      %1803 = vmatmul.mubr.f32.gmra.mrb[0].mxu0 %v351
      %v1804 = vpop.f32.mrb[0].mxu0
      %v1805 = vadd.f32 0.0, %v1804
      %v1806 = vpop.f32.mrb[0].mxu0
      %1807 = vmatprep.mubr.f32.mxu0 0.0
      %1808 = vmatmul.mubr.f32.gmra.mrb[0].mxu0 %v354
      %v1809 = vpop.f32.mrb[0].mxu0
      %v1810 = vadd.f32 0.0, %v1809
      %v1811 = vpop.f32.mrb[0].mxu0
      %1812 = vmatprep.mubr.f32.mxu0 0.0
      %1813 = vmatmul.mubr.f32.gmra.mrb[0].mxu0 %v357
      %v1814 = vpop.f32.mrb[0].mxu0
      %v1815 = vadd.f32 0.0, %v1814
      %v1816 = vpop.f32.mrb[0].mxu0
      %1817 = vmatprep.mubr.f32.mxu0 0.0
      %1818 = vmatmul.mubr.f32.gmra.mrb[0].mxu0 %v360
      %v1819 = vpop.f32.mrb[0].mxu0
      %v1820 = vadd.f32 0.0, %v1819
      %v1821 = vpop.f32.mrb[0].mxu0
      %1822 = vmatprep.mubr.f32.mxu0 0.0
      %1823 = vmatmul.mubr.f32.gmra.mrb[0].mxu0 %v363
      %v1824 = vpop.f32.mrb[0].mxu0
      %v1825 = vadd.f32 0.0, %v1824
      %v1826 = vpop.f32.mrb[0].mxu0
      %1827 = vmatprep.mubr.f32.mxu0 0.0
      %1828 = vmatmul.mubr.f32.gmra.mrb[0].mxu0 %v366
      %v1829 = vpop.f32.mrb[0].mxu0
      %v1830 = vadd.f32 0.0, %v1829
      %v1831 = vpop.f32.mrb[0].mxu0
      %1832 = vmatprep.mubr.f32.mxu0 0.0
      %1833 = vmatmul.mubr.f32.gmra.mrb[0].mxu0 %v369
      %v1834 = vpop.f32.mrb[0].mxu0
      %v1835 = vadd.f32 0.0, %v1834
      %v1836 = vpop.f32.mrb[0].mxu0
      %1837 = vmatprep.mubr.f32.mxu0 0.0
      %1838 = vmatmul.mubr.f32.gmra.mrb[0].mxu0 %v372
      %v1839 = vpop.f32.mrb[0].mxu0
      %v1840 = vadd.f32 0.0, %v1839
      %v1841 = vpop.f32.mrb[0].mxu0
      %1842 = vmatprep.mubr.f32.mxu0 0.0
      %1843 = vmatmul.mubr.f32.gmra.mrb[0].mxu0 %v375
      %v1844 = vpop.f32.mrb[0].mxu0
      %v1845 = vadd.f32 0.0, %v1844
      %v1846 = vpop.f32.mrb[0].mxu0
      %1847 = vmatprep.mubr.f32.mxu0 0.0
      %1848 = vmatmul.mubr.f32.gmra.mrb[0].mxu0 %v1096
      %v1849 = vpop.f32.mrb[0].mxu0
      %v1850 = vadd.f32 0.0, %v1849
      %v1851 = vpop.f32.mrb[0].mxu0
      %1852 = vmatprep.mubr.f32.mxu0 0.0
      %1853 = vmatmul.mubr.f32.gmra.mrb[0].mxu0 %v1099
      %v1854 = vpop.f32.mrb[0].mxu0
      %v1855 = vadd.f32 0.0, %v1854
      %v1856 = vpop.f32.mrb[0].mxu0
      %1857 = vmatprep.mubr.f32.mxu0 0.0
      %1858 = vmatmul.mubr.f32.gmra.mrb[0].mxu0 %v1715
      %v1859 = vpop.f32.mrb[0].mxu0
      %v1860 = vadd.f32 0.0, %v1859
      %v1861 = vpop.f32.mrb[0].mxu0
      %1862 = vmatprep.mubr.f32.mxu0 0.0
      %1863 = vmatmul.mubr.f32.gmra.mrb[0].mxu0 %v1718
      %v1864 = vpop.f32.mrb[0].mxu0
      %v1865 = vadd.f32 0.0, %v1864
      %v1866 = vpop.f32.mrb[0].mxu0
      %1867 = vdwg.mxu0
      %v1868 = vld [vmem:[#allocation2] sm:$0xff]
      %v1869 = vld [vmem:[#allocation2 + $0x8] sm:$0xff]
      %v1870 = vld [vmem:[#allocation2 + $0x10] sm:$0xff]
      %v1871 = vld [vmem:[#allocation2 + $0x18] sm:$0xff]
      %v1872 = vld [vmem:[#allocation2 + $0x20] sm:$0xff]
      %v1873 = vld [vmem:[#allocation2 + $0x28] sm:$0xff]
      %v1874 = vld [vmem:[#allocation2 + $0x30] sm:$0xff]
      %v1875 = vld [vmem:[#allocation2 + $0x38] sm:$0xff]
      %v1876 = vld [vmem:[#allocation2 + $0x40] sm:$0xff]
      %v1877 = vld [vmem:[#allocation2 + $0x48] sm:$0xff]
      %v1878 = vld [vmem:[#allocation2 + $0x50] sm:$0xff]
      %v1879 = vld [vmem:[#allocation2 + $0x58] sm:$0xff]
      %v1880 = vld [vmem:[#allocation2 + $0x60] sm:$0xff]
      %v1881 = vld [vmem:[#allocation2 + $0x68] sm:$0xff]
      %v1882 = vld [vmem:[#allocation2 + $0x70] sm:$0xff]
      %v1883 = vld [vmem:[#allocation2 + $0x78] sm:$0xff]
      %v1884 = vadd.f32 %v1868, %v1790
      %v1885 = vadd.f32 %v1869, %v1795
      %v1886 = vadd.f32 %v1870, %v1800
      %v1887 = vadd.f32 %v1871, %v1805
      %v1888 = vadd.f32 %v1872, %v1810
      %v1889 = vadd.f32 %v1873, %v1815
      %v1890 = vadd.f32 %v1874, %v1820
      %v1891 = vadd.f32 %v1875, %v1825
      %v1892 = vadd.f32 %v1876, %v1830
      %v1893 = vadd.f32 %v1877, %v1835
      %v1894 = vadd.f32 %v1878, %v1840
      %v1895 = vadd.f32 %v1879, %v1845
      %v1896 = vadd.f32 %v1880, %v1850
      %v1897 = vadd.f32 %v1881, %v1855
      %v1898 = vadd.f32 %v1882, %v1860
      %v1899 = vadd.f32 %v1883, %v1865
      %1900 = vst.msk [vmem:[#allocation2] sm:$0xff] %vm526, %v1884
      %1901 = vst.msk [vmem:[#allocation2 + $0x8] sm:$0xff] %vm526, %v1885
      %1902 = vst.msk [vmem:[#allocation2 + $0x10] sm:$0xff] %vm526, %v1886
      %1903 = vst.msk [vmem:[#allocation2 + $0x18] sm:$0xff] %vm526, %v1887
      %1904 = vst.msk [vmem:[#allocation2 + $0x20] sm:$0xff] %vm526, %v1888
      %1905 = vst.msk [vmem:[#allocation2 + $0x28] sm:$0xff] %vm526, %v1889
      %1906 = vst.msk [vmem:[#allocation2 + $0x30] sm:$0xff] %vm526, %v1890
      %1907 = vst.msk [vmem:[#allocation2 + $0x38] sm:$0xff] %vm526, %v1891
      %1908 = vst.msk [vmem:[#allocation2 + $0x40] sm:$0xff] %vm526, %v1892
      %1909 = vst.msk [vmem:[#allocation2 + $0x48] sm:$0xff] %vm526, %v1893
      %1910 = vst.msk [vmem:[#allocation2 + $0x50] sm:$0xff] %vm526, %v1894
      %1911 = vst.msk [vmem:[#allocation2 + $0x58] sm:$0xff] %vm526, %v1895
      %1912 = vst.msk [vmem:[#allocation2 + $0x60] sm:$0xff] %vm526, %v1896
      %1913 = vst.msk [vmem:[#allocation2 + $0x68] sm:$0xff] %vm526, %v1897
      %1914 = vst.msk [vmem:[#allocation2 + $0x70] sm:$0xff] %vm526, %v1898
      %1915 = vst.msk [vmem:[#allocation2 + $0x78] sm:$0xff] %vm526, %v1899
      %s1916 = scalar_lea.vmem %s276, 28
      %v1917 = vld [vmem:[%s1916] sm:$0xf]
      %v1919 = vrot.slane %v324, 1
      %v1920 = vrot.slane %v325, 1
      %v1921 = vsel %vm553, %v1919, %v1920
      %v1922 = vrot.slane %v326, 1
      %v1923 = vsel %vm553, %v1920, %v1922
      %v1924 = vsel %vm328, %v1921, 0
      %v1926 = vsel %vm328, %v1923, 0
      %v1929 = vsel %vm377, %v1917, 0
      %1931 = vmatprep.subr.mxu0 0.0
      %1932 = vmatpush1.msra.mxu0 %v1929
      %1933 = vmatprep.subr.mxu0 0.0
      %1934 = vmatpush1.msra.mxu0 0.0
      %1935 = vmatprep.subr.mxu0 0.0
      %1936 = vmatpush1.msra.mxu0 0.0
      %1937 = vmatprep.subr.mxu0 0.0
      %1938 = vmatpush1.msra.mxu0 0.0
      %1939 = vmatprep.subr.mxu0 0.0
      %1940 = vmatpush1.msra.mxu0 0.0
      %1941 = vmatprep.subr.mxu0 0.0
      %1942 = vmatpush1.msra.mxu0 0.0
      %1943 = vmatprep.subr.mxu0 0.0
      %1944 = vmatpush1.msra.mxu0 0.0
      %1945 = vmatprep.subr.mxu0 0.0
      %1946 = vmatpush1.msra.mxu0 0.0
      %1947 = vmatprep.subr.mxu0 0.0
      %1948 = vmatpush1.msra.mxu0 0.0
      %1949 = vmatprep.subr.mxu0 0.0
      %1950 = vmatpush1.msra.mxu0 0.0
      %1951 = vmatprep.subr.mxu0 0.0
      %1952 = vmatpush1.msra.mxu0 0.0
      %1953 = vmatprep.subr.mxu0 0.0
      %1954 = vmatpush1.msra.mxu0 0.0
      %1955 = vmatprep.subr.mxu0 0.0
      %1956 = vmatpush1.msra.mxu0 0.0
      %1957 = vmatprep.subr.mxu0 0.0
      %1958 = vmatpush1.msra.mxu0 0.0
      %1959 = vmatprep.subr.mxu0 0.0
      %1960 = vmatpush1.msra.mxu0 0.0
      %1961 = vmatprep.subr.mxu0 0.0
      %1962 = vmatpush1.msra.mxu0 0.0
      %1963 = vmatprep.subr.mxu0 0.0
      %1964 = vmatpush1.msra.mxu0 0.0
      %1965 = vmatprep.subr.mxu0 0.0
      %1966 = vmatpush1.msra.mxu0 0.0
      %1967 = vmatprep.subr.mxu0 0.0
      %1968 = vmatpush1.msra.mxu0 0.0
      %1969 = vmatprep.subr.mxu0 0.0
      %1970 = vmatpush1.msra.mxu0 0.0
      %1971 = vmatprep.subr.mxu0 0.0
      %1972 = vmatpush1.msra.mxu0 0.0
      %1973 = vmatprep.subr.mxu0 0.0
      %1974 = vmatpush1.msra.mxu0 0.0
      %1975 = vmatprep.subr.mxu0 0.0
      %1976 = vmatpush1.msra.mxu0 0.0
      %1977 = vmatprep.subr.mxu0 0.0
      %1978 = vmatpush1.msra.mxu0 0.0
      %1979 = vmatprep.subr.mxu0 0.0
      %1980 = vmatpush1.msra.mxu0 0.0
      %1981 = vmatprep.subr.mxu0 0.0
      %1982 = vmatpush1.msra.mxu0 0.0
      %1983 = vmatprep.subr.mxu0 0.0
      %1984 = vmatpush1.msra.mxu0 0.0
      %1985 = vmatprep.subr.mxu0 0.0
      %1986 = vmatpush1.msra.mxu0 0.0
      %1987 = vmatprep.subr.mxu0 0.0
      %1988 = vmatpush1.msra.mxu0 0.0
      %1989 = vmatprep.subr.mxu0 0.0
      %1990 = vmatpush1.msra.mxu0 0.0
      %1991 = vmatprep.subr.mxu0 0.0
      %1992 = vmatpush1.msra.mxu0 0.0
      %1993 = vmatprep.subr.mxu0 0.0
      %1994 = vmatpush1.msra.mxu0 0.0
      %1995 = vmatprep.mubr.f32.mxu0 0.0
      %1996 = vmatmul.mubr.f32.gmra.mrb[0].mxu0 %v602
      %v1997 = vpop.f32.mrb[0].mxu0
      %v1998 = vadd.f32 0.0, %v1997
      %v1999 = vpop.f32.mrb[0].mxu0
      %2000 = vmatprep.mubr.f32.mxu0 0.0
      %2001 = vmatmul.mubr.f32.gmra.mrb[0].mxu0 %v604
      %v2002 = vpop.f32.mrb[0].mxu0
      %v2003 = vadd.f32 0.0, %v2002
      %v2004 = vpop.f32.mrb[0].mxu0
      %2005 = vmatprep.mubr.f32.mxu0 0.0
      %2006 = vmatmul.mubr.f32.gmra.mrb[0].mxu0 %v606
      %v2007 = vpop.f32.mrb[0].mxu0
      %v2008 = vadd.f32 0.0, %v2007
      %v2009 = vpop.f32.mrb[0].mxu0
      %2010 = vmatprep.mubr.f32.mxu0 0.0
      %2011 = vmatmul.mubr.f32.gmra.mrb[0].mxu0 %v608
      %v2012 = vpop.f32.mrb[0].mxu0
      %v2013 = vadd.f32 0.0, %v2012
      %v2014 = vpop.f32.mrb[0].mxu0
      %2015 = vmatprep.mubr.f32.mxu0 0.0
      %2016 = vmatmul.mubr.f32.gmra.mrb[0].mxu0 %v610
      %v2017 = vpop.f32.mrb[0].mxu0
      %v2018 = vadd.f32 0.0, %v2017
      %v2019 = vpop.f32.mrb[0].mxu0
      %2020 = vmatprep.mubr.f32.mxu0 0.0
      %2021 = vmatmul.mubr.f32.gmra.mrb[0].mxu0 %v612
      %v2022 = vpop.f32.mrb[0].mxu0
      %v2023 = vadd.f32 0.0, %v2022
      %v2024 = vpop.f32.mrb[0].mxu0
      %2025 = vmatprep.mubr.f32.mxu0 0.0
      %2026 = vmatmul.mubr.f32.gmra.mrb[0].mxu0 %v614
      %v2027 = vpop.f32.mrb[0].mxu0
      %v2028 = vadd.f32 0.0, %v2027
      %v2029 = vpop.f32.mrb[0].mxu0
      %2030 = vmatprep.mubr.f32.mxu0 0.0
      %2031 = vmatmul.mubr.f32.gmra.mrb[0].mxu0 %v616
      %v2032 = vpop.f32.mrb[0].mxu0
      %v2033 = vadd.f32 0.0, %v2032
      %v2034 = vpop.f32.mrb[0].mxu0
      %2035 = vmatprep.mubr.f32.mxu0 0.0
      %2036 = vmatmul.mubr.f32.gmra.mrb[0].mxu0 %v618
      %v2037 = vpop.f32.mrb[0].mxu0
      %v2038 = vadd.f32 0.0, %v2037
      %v2039 = vpop.f32.mrb[0].mxu0
      %2040 = vmatprep.mubr.f32.mxu0 0.0
      %2041 = vmatmul.mubr.f32.gmra.mrb[0].mxu0 %v620
      %v2042 = vpop.f32.mrb[0].mxu0
      %v2043 = vadd.f32 0.0, %v2042
      %v2044 = vpop.f32.mrb[0].mxu0
      %2045 = vmatprep.mubr.f32.mxu0 0.0
      %2046 = vmatmul.mubr.f32.gmra.mrb[0].mxu0 %v622
      %v2047 = vpop.f32.mrb[0].mxu0
      %v2048 = vadd.f32 0.0, %v2047
      %v2049 = vpop.f32.mrb[0].mxu0
      %2050 = vmatprep.mubr.f32.mxu0 0.0
      %2051 = vmatmul.mubr.f32.gmra.mrb[0].mxu0 %v624
      %v2052 = vpop.f32.mrb[0].mxu0
      %v2053 = vadd.f32 0.0, %v2052
      %v2054 = vpop.f32.mrb[0].mxu0
      %2055 = vmatprep.mubr.f32.mxu0 0.0
      %2056 = vmatmul.mubr.f32.gmra.mrb[0].mxu0 %v1305
      %v2057 = vpop.f32.mrb[0].mxu0
      %v2058 = vadd.f32 0.0, %v2057
      %v2059 = vpop.f32.mrb[0].mxu0
      %2060 = vmatprep.mubr.f32.mxu0 0.0
      %2061 = vmatmul.mubr.f32.gmra.mrb[0].mxu0 %v1307
      %v2062 = vpop.f32.mrb[0].mxu0
      %v2063 = vadd.f32 0.0, %v2062
      %v2064 = vpop.f32.mrb[0].mxu0
      %2065 = vmatprep.mubr.f32.mxu0 0.0
      %2066 = vmatmul.mubr.f32.gmra.mrb[0].mxu0 %v1924
      %v2067 = vpop.f32.mrb[0].mxu0
      %v2068 = vadd.f32 0.0, %v2067
      %v2069 = vpop.f32.mrb[0].mxu0
      %2070 = vmatprep.mubr.f32.mxu0 0.0
      %2071 = vmatmul.mubr.f32.gmra.mrb[0].mxu0 %v1926
      %v2072 = vpop.f32.mrb[0].mxu0
      %v2073 = vadd.f32 0.0, %v2072
      %v2074 = vpop.f32.mrb[0].mxu0
      %2075 = vdwg.mxu0
      %v2076 = vld [vmem:[#allocation2] sm:$0xff]
      %v2077 = vld [vmem:[#allocation2 + $0x8] sm:$0xff]
      %v2078 = vld [vmem:[#allocation2 + $0x10] sm:$0xff]
      %v2079 = vld [vmem:[#allocation2 + $0x18] sm:$0xff]
      %v2080 = vld [vmem:[#allocation2 + $0x20] sm:$0xff]
      %v2081 = vld [vmem:[#allocation2 + $0x28] sm:$0xff]
      %v2082 = vld [vmem:[#allocation2 + $0x30] sm:$0xff]
      %v2083 = vld [vmem:[#allocation2 + $0x38] sm:$0xff]
      %v2084 = vld [vmem:[#allocation2 + $0x40] sm:$0xff]
      %v2085 = vld [vmem:[#allocation2 + $0x48] sm:$0xff]
      %v2086 = vld [vmem:[#allocation2 + $0x50] sm:$0xff]
      %v2087 = vld [vmem:[#allocation2 + $0x58] sm:$0xff]
      %v2088 = vld [vmem:[#allocation2 + $0x60] sm:$0xff]
      %v2089 = vld [vmem:[#allocation2 + $0x68] sm:$0xff]
      %v2090 = vld [vmem:[#allocation2 + $0x70] sm:$0xff]
      %v2091 = vld [vmem:[#allocation2 + $0x78] sm:$0xff]
      %v2092 = vadd.f32 %v2076, %v1998
      %v2093 = vadd.f32 %v2077, %v2003
      %v2094 = vadd.f32 %v2078, %v2008
      %v2095 = vadd.f32 %v2079, %v2013
      %v2096 = vadd.f32 %v2080, %v2018
      %v2097 = vadd.f32 %v2081, %v2023
      %v2098 = vadd.f32 %v2082, %v2028
      %v2099 = vadd.f32 %v2083, %v2033
      %v2100 = vadd.f32 %v2084, %v2038
      %v2101 = vadd.f32 %v2085, %v2043
      %v2102 = vadd.f32 %v2086, %v2048
      %v2103 = vadd.f32 %v2087, %v2053
      %v2104 = vadd.f32 %v2088, %v2058
      %v2105 = vadd.f32 %v2089, %v2063
      %v2106 = vadd.f32 %v2090, %v2068
      %v2107 = vadd.f32 %v2091, %v2073
      %2108 = vst.msk [vmem:[#allocation2] sm:$0xff] %vm526, %v2092
      %2109 = vst.msk [vmem:[#allocation2 + $0x8] sm:$0xff] %vm526, %v2093
      %2110 = vst.msk [vmem:[#allocation2 + $0x10] sm:$0xff] %vm526, %v2094
      %2111 = vst.msk [vmem:[#allocation2 + $0x18] sm:$0xff] %vm526, %v2095
      %2112 = vst.msk [vmem:[#allocation2 + $0x20] sm:$0xff] %vm526, %v2096
      %2113 = vst.msk [vmem:[#allocation2 + $0x28] sm:$0xff] %vm526, %v2097
      %2114 = vst.msk [vmem:[#allocation2 + $0x30] sm:$0xff] %vm526, %v2098
      %2115 = vst.msk [vmem:[#allocation2 + $0x38] sm:$0xff] %vm526, %v2099
      %2116 = vst.msk [vmem:[#allocation2 + $0x40] sm:$0xff] %vm526, %v2100
      %2117 = vst.msk [vmem:[#allocation2 + $0x48] sm:$0xff] %vm526, %v2101
      %2118 = vst.msk [vmem:[#allocation2 + $0x50] sm:$0xff] %vm526, %v2102
      %2119 = vst.msk [vmem:[#allocation2 + $0x58] sm:$0xff] %vm526, %v2103
      %2120 = vst.msk [vmem:[#allocation2 + $0x60] sm:$0xff] %vm526, %v2104
      %2121 = vst.msk [vmem:[#allocation2 + $0x68] sm:$0xff] %vm526, %v2105
      %2122 = vst.msk [vmem:[#allocation2 + $0x70] sm:$0xff] %vm526, %v2106
      %2123 = vst.msk [vmem:[#allocation2 + $0x78] sm:$0xff] %vm526, %v2107
      %s2124 = scalar_lea.vmem %s276, 32
      %v2125 = vld [vmem:[%s2124] sm:$0xf]
      %v2126 = vrot.slane %v324, 2
      %v2127 = vrot.slane %v325, 2
      %v2128 = vsel %vm824, %v2126, %v2127
      %v2129 = vrot.slane %v326, 2
      %v2130 = vsel %vm824, %v2127, %v2129
      %v2131 = vsel %vm328, %v2128, 0
      %v2133 = vsel %vm328, %v2130, 0
      %v2136 = vsel %vm377, %v2125, 0
      %2138 = vmatprep.subr.mxu0 0.0
      %2139 = vmatpush1.msra.mxu0 %v2136
      %2140 = vmatprep.subr.mxu0 0.0
      %2141 = vmatpush1.msra.mxu0 0.0
      %2142 = vmatprep.subr.mxu0 0.0
      %2143 = vmatpush1.msra.mxu0 0.0
      %2144 = vmatprep.subr.mxu0 0.0
      %2145 = vmatpush1.msra.mxu0 0.0
      %2146 = vmatprep.subr.mxu0 0.0
      %2147 = vmatpush1.msra.mxu0 0.0
      %2148 = vmatprep.subr.mxu0 0.0
      %2149 = vmatpush1.msra.mxu0 0.0
      %2150 = vmatprep.subr.mxu0 0.0
      %2151 = vmatpush1.msra.mxu0 0.0
      %2152 = vmatprep.subr.mxu0 0.0
      %2153 = vmatpush1.msra.mxu0 0.0
      %2154 = vmatprep.subr.mxu0 0.0
      %2155 = vmatpush1.msra.mxu0 0.0
      %2156 = vmatprep.subr.mxu0 0.0
      %2157 = vmatpush1.msra.mxu0 0.0
      %2158 = vmatprep.subr.mxu0 0.0
      %2159 = vmatpush1.msra.mxu0 0.0
      %2160 = vmatprep.subr.mxu0 0.0
      %2161 = vmatpush1.msra.mxu0 0.0
      %2162 = vmatprep.subr.mxu0 0.0
      %2163 = vmatpush1.msra.mxu0 0.0
      %2164 = vmatprep.subr.mxu0 0.0
      %2165 = vmatpush1.msra.mxu0 0.0
      %2166 = vmatprep.subr.mxu0 0.0
      %2167 = vmatpush1.msra.mxu0 0.0
      %2168 = vmatprep.subr.mxu0 0.0
      %2169 = vmatpush1.msra.mxu0 0.0
      %2170 = vmatprep.subr.mxu0 0.0
      %2171 = vmatpush1.msra.mxu0 0.0
      %2172 = vmatprep.subr.mxu0 0.0
      %2173 = vmatpush1.msra.mxu0 0.0
      %2174 = vmatprep.subr.mxu0 0.0
      %2175 = vmatpush1.msra.mxu0 0.0
      %2176 = vmatprep.subr.mxu0 0.0
      %2177 = vmatpush1.msra.mxu0 0.0
      %2178 = vmatprep.subr.mxu0 0.0
      %2179 = vmatpush1.msra.mxu0 0.0
      %2180 = vmatprep.subr.mxu0 0.0
      %2181 = vmatpush1.msra.mxu0 0.0
      %2182 = vmatprep.subr.mxu0 0.0
      %2183 = vmatpush1.msra.mxu0 0.0
      %2184 = vmatprep.subr.mxu0 0.0
      %2185 = vmatpush1.msra.mxu0 0.0
      %2186 = vmatprep.subr.mxu0 0.0
      %2187 = vmatpush1.msra.mxu0 0.0
      %2188 = vmatprep.subr.mxu0 0.0
      %2189 = vmatpush1.msra.mxu0 0.0
      %2190 = vmatprep.subr.mxu0 0.0
      %2191 = vmatpush1.msra.mxu0 0.0
      %2192 = vmatprep.subr.mxu0 0.0
      %2193 = vmatpush1.msra.mxu0 0.0
      %2194 = vmatprep.subr.mxu0 0.0
      %2195 = vmatpush1.msra.mxu0 0.0
      %2196 = vmatprep.subr.mxu0 0.0
      %2197 = vmatpush1.msra.mxu0 0.0
      %2198 = vmatprep.subr.mxu0 0.0
      %2199 = vmatpush1.msra.mxu0 0.0
      %2200 = vmatprep.subr.mxu0 0.0
      %2201 = vmatpush1.msra.mxu0 0.0
      %2202 = vmatprep.mubr.f32.mxu0 0.0
      %2203 = vmatmul.mubr.f32.gmra.mrb[0].mxu0 %v873
      %v2204 = vpop.f32.mrb[0].mxu0
      %v2205 = vadd.f32 0.0, %v2204
      %v2206 = vpop.f32.mrb[0].mxu0
      %2207 = vmatprep.mubr.f32.mxu0 0.0
      %2208 = vmatmul.mubr.f32.gmra.mrb[0].mxu0 %v875
      %v2209 = vpop.f32.mrb[0].mxu0
      %v2210 = vadd.f32 0.0, %v2209
      %v2211 = vpop.f32.mrb[0].mxu0
      %2212 = vmatprep.mubr.f32.mxu0 0.0
      %2213 = vmatmul.mubr.f32.gmra.mrb[0].mxu0 %v877
      %v2214 = vpop.f32.mrb[0].mxu0
      %v2215 = vadd.f32 0.0, %v2214
      %v2216 = vpop.f32.mrb[0].mxu0
      %2217 = vmatprep.mubr.f32.mxu0 0.0
      %2218 = vmatmul.mubr.f32.gmra.mrb[0].mxu0 %v879
      %v2219 = vpop.f32.mrb[0].mxu0
      %v2220 = vadd.f32 0.0, %v2219
      %v2221 = vpop.f32.mrb[0].mxu0
      %2222 = vmatprep.mubr.f32.mxu0 0.0
      %2223 = vmatmul.mubr.f32.gmra.mrb[0].mxu0 %v881
      %v2224 = vpop.f32.mrb[0].mxu0
      %v2225 = vadd.f32 0.0, %v2224
      %v2226 = vpop.f32.mrb[0].mxu0
      %2227 = vmatprep.mubr.f32.mxu0 0.0
      %2228 = vmatmul.mubr.f32.gmra.mrb[0].mxu0 %v883
      %v2229 = vpop.f32.mrb[0].mxu0
      %v2230 = vadd.f32 0.0, %v2229
      %v2231 = vpop.f32.mrb[0].mxu0
      %2232 = vmatprep.mubr.f32.mxu0 0.0
      %2233 = vmatmul.mubr.f32.gmra.mrb[0].mxu0 %v885
      %v2234 = vpop.f32.mrb[0].mxu0
      %v2235 = vadd.f32 0.0, %v2234
      %v2236 = vpop.f32.mrb[0].mxu0
      %2237 = vmatprep.mubr.f32.mxu0 0.0
      %2238 = vmatmul.mubr.f32.gmra.mrb[0].mxu0 %v887
      %v2239 = vpop.f32.mrb[0].mxu0
      %v2240 = vadd.f32 0.0, %v2239
      %v2241 = vpop.f32.mrb[0].mxu0
      %2242 = vmatprep.mubr.f32.mxu0 0.0
      %2243 = vmatmul.mubr.f32.gmra.mrb[0].mxu0 %v889
      %v2244 = vpop.f32.mrb[0].mxu0
      %v2245 = vadd.f32 0.0, %v2244
      %v2246 = vpop.f32.mrb[0].mxu0
      %2247 = vmatprep.mubr.f32.mxu0 0.0
      %2248 = vmatmul.mubr.f32.gmra.mrb[0].mxu0 %v891
      %v2249 = vpop.f32.mrb[0].mxu0
      %v2250 = vadd.f32 0.0, %v2249
      %v2251 = vpop.f32.mrb[0].mxu0
      %2252 = vmatprep.mubr.f32.mxu0 0.0
      %2253 = vmatmul.mubr.f32.gmra.mrb[0].mxu0 %v893
      %v2254 = vpop.f32.mrb[0].mxu0
      %v2255 = vadd.f32 0.0, %v2254
      %v2256 = vpop.f32.mrb[0].mxu0
      %2257 = vmatprep.mubr.f32.mxu0 0.0
      %2258 = vmatmul.mubr.f32.gmra.mrb[0].mxu0 %v895
      %v2259 = vpop.f32.mrb[0].mxu0
      %v2260 = vadd.f32 0.0, %v2259
      %v2261 = vpop.f32.mrb[0].mxu0
      %2262 = vmatprep.mubr.f32.mxu0 0.0
      %2263 = vmatmul.mubr.f32.gmra.mrb[0].mxu0 %v1512
      %v2264 = vpop.f32.mrb[0].mxu0
      %v2265 = vadd.f32 0.0, %v2264
      %v2266 = vpop.f32.mrb[0].mxu0
      %2267 = vmatprep.mubr.f32.mxu0 0.0
      %2268 = vmatmul.mubr.f32.gmra.mrb[0].mxu0 %v1514
      %v2269 = vpop.f32.mrb[0].mxu0
      %v2270 = vadd.f32 0.0, %v2269
      %v2271 = vpop.f32.mrb[0].mxu0
      %2272 = vmatprep.mubr.f32.mxu0 0.0
      %2273 = vmatmul.mubr.f32.gmra.mrb[0].mxu0 %v2131
      %v2274 = vpop.f32.mrb[0].mxu0
      %v2275 = vadd.f32 0.0, %v2274
      %v2276 = vpop.f32.mrb[0].mxu0
      %2277 = vmatprep.mubr.f32.mxu0 0.0
      %2278 = vmatmul.mubr.f32.gmra.mrb[0].mxu0 %v2133
      %v2279 = vpop.f32.mrb[0].mxu0
      %v2280 = vadd.f32 0.0, %v2279
      %v2281 = vpop.f32.mrb[0].mxu0
      %2282 = vdwg.mxu0
      %v2283 = vld [vmem:[#allocation2] sm:$0xff]
      %v2284 = vld [vmem:[#allocation2 + $0x8] sm:$0xff]
      %v2285 = vld [vmem:[#allocation2 + $0x10] sm:$0xff]
      %v2286 = vld [vmem:[#allocation2 + $0x18] sm:$0xff]
      %v2287 = vld [vmem:[#allocation2 + $0x20] sm:$0xff]
      %v2288 = vld [vmem:[#allocation2 + $0x28] sm:$0xff]
      %v2289 = vld [vmem:[#allocation2 + $0x30] sm:$0xff]
      %v2290 = vld [vmem:[#allocation2 + $0x38] sm:$0xff]
      %v2291 = vld [vmem:[#allocation2 + $0x40] sm:$0xff]
      %v2292 = vld [vmem:[#allocation2 + $0x48] sm:$0xff]
      %v2293 = vld [vmem:[#allocation2 + $0x50] sm:$0xff]
      %v2294 = vld [vmem:[#allocation2 + $0x58] sm:$0xff]
      %v2295 = vld [vmem:[#allocation2 + $0x60] sm:$0xff]
      %v2296 = vld [vmem:[#allocation2 + $0x68] sm:$0xff]
      %v2297 = vld [vmem:[#allocation2 + $0x70] sm:$0xff]
      %v2298 = vld [vmem:[#allocation2 + $0x78] sm:$0xff]
      %v2299 = vadd.f32 %v2283, %v2205
      %v2300 = vadd.f32 %v2284, %v2210
      %v2301 = vadd.f32 %v2285, %v2215
      %v2302 = vadd.f32 %v2286, %v2220
      %v2303 = vadd.f32 %v2287, %v2225
      %v2304 = vadd.f32 %v2288, %v2230
      %v2305 = vadd.f32 %v2289, %v2235
      %v2306 = vadd.f32 %v2290, %v2240
      %v2307 = vadd.f32 %v2291, %v2245
      %v2308 = vadd.f32 %v2292, %v2250
      %v2309 = vadd.f32 %v2293, %v2255
      %v2310 = vadd.f32 %v2294, %v2260
      %v2311 = vadd.f32 %v2295, %v2265
      %v2312 = vadd.f32 %v2296, %v2270
      %v2313 = vadd.f32 %v2297, %v2275
      %v2314 = vadd.f32 %v2298, %v2280
      %2315 = vst.msk [vmem:[#allocation2] sm:$0xff] %vm526, %v2299
      %2316 = vst.msk [vmem:[#allocation2 + $0x8] sm:$0xff] %vm526, %v2300
      %2317 = vst.msk [vmem:[#allocation2 + $0x10] sm:$0xff] %vm526, %v2301
      %2318 = vst.msk [vmem:[#allocation2 + $0x18] sm:$0xff] %vm526, %v2302
      %2319 = vst.msk [vmem:[#allocation2 + $0x20] sm:$0xff] %vm526, %v2303
      %2320 = vst.msk [vmem:[#allocation2 + $0x28] sm:$0xff] %vm526, %v2304
      %2321 = vst.msk [vmem:[#allocation2 + $0x30] sm:$0xff] %vm526, %v2305
      %2322 = vst.msk [vmem:[#allocation2 + $0x38] sm:$0xff] %vm526, %v2306
      %2323 = vst.msk [vmem:[#allocation2 + $0x40] sm:$0xff] %vm526, %v2307
      %2324 = vst.msk [vmem:[#allocation2 + $0x48] sm:$0xff] %vm526, %v2308
      %2325 = vst.msk [vmem:[#allocation2 + $0x50] sm:$0xff] %vm526, %v2309
      %2326 = vst.msk [vmem:[#allocation2 + $0x58] sm:$0xff] %vm526, %v2310
      %2327 = vst.msk [vmem:[#allocation2 + $0x60] sm:$0xff] %vm526, %v2311
      %2328 = vst.msk [vmem:[#allocation2 + $0x68] sm:$0xff] %vm526, %v2312
      %2329 = vst.msk [vmem:[#allocation2 + $0x70] sm:$0xff] %vm526, %v2313
      %2330 = vst.msk [vmem:[#allocation2 + $0x78] sm:$0xff] %vm526, %v2314
      %v2331 = vld [vmem:[#allocation2] sm:$0xff]
      %v2332 = vld [vmem:[#allocation2 + $0x8] sm:$0xff]
      %v2333 = vld [vmem:[#allocation2 + $0x10] sm:$0xff]
      %v2334 = vld [vmem:[#allocation2 + $0x18] sm:$0xff]
      %v2335 = vld [vmem:[#allocation2 + $0x20] sm:$0xff]
      %v2336 = vld [vmem:[#allocation2 + $0x28] sm:$0xff]
      %v2337 = vld [vmem:[#allocation2 + $0x30] sm:$0xff]
      %v2338 = vld [vmem:[#allocation2 + $0x38] sm:$0xff]
      %v2339 = vld [vmem:[#allocation2 + $0x40] sm:$0xff]
      %v2340 = vld [vmem:[#allocation2 + $0x48] sm:$0xff]
      %v2341 = vld [vmem:[#allocation2 + $0x50] sm:$0xff]
      %v2342 = vld [vmem:[#allocation2 + $0x58] sm:$0xff]
      %v2343 = vld [vmem:[#allocation2 + $0x60] sm:$0xff]
      %v2344 = vld [vmem:[#allocation2 + $0x68] sm:$0xff]
      %v2345 = vld [vmem:[#allocation2 + $0x70] sm:$0xff]
      %v2346 = vld [vmem:[#allocation2 + $0x78] sm:$0xff]
      %v2347 = vld [vmem:[%s279] sm:$0x1]
      %v2349 = vlaneseq
      %v2350 = vshrl.u32 %v2349, 7
      %v2351 = vsub.s32 0, %v2350
      %v2352 = vrot.slane %v2347, %v2351
      %v2354 = vmul.f32 %v2331, %v2352
      %v2355 = vmul.f32 %v2332, %v2352
      %v2356 = vmul.f32 %v2333, %v2352
      %v2357 = vmul.f32 %v2334, %v2352
      %v2358 = vmul.f32 %v2335, %v2352
      %v2359 = vmul.f32 %v2336, %v2352
      %v2360 = vmul.f32 %v2337, %v2352
      %v2361 = vmul.f32 %v2338, %v2352
      %v2362 = vmul.f32 %v2339, %v2352
      %v2363 = vmul.f32 %v2340, %v2352
      %v2364 = vmul.f32 %v2341, %v2352
      %v2365 = vmul.f32 %v2342, %v2352
      %v2366 = vmul.f32 %v2343, %v2352
      %v2367 = vmul.f32 %v2344, %v2352
      %v2368 = vmul.f32 %v2345, %v2352
      %v2369 = vmul.f32 %v2346, %v2352
      %v2370 = vld [vmem:[%s282] sm:$0x1]
      %v2372 = vlaneseq
      %v2373 = vshrl.u32 %v2372, 7
      %v2374 = vsub.s32 0, %v2373
      %v2375 = vrot.slane %v2370, %v2374
      %v2377 = vadd.f32 %v2354, %v2375
      %v2378 = vadd.f32 %v2355, %v2375
      %v2379 = vadd.f32 %v2356, %v2375
      %v2380 = vadd.f32 %v2357, %v2375
      %v2381 = vadd.f32 %v2358, %v2375
      %v2382 = vadd.f32 %v2359, %v2375
      %v2383 = vadd.f32 %v2360, %v2375
      %v2384 = vadd.f32 %v2361, %v2375
      %v2385 = vadd.f32 %v2362, %v2375
      %v2386 = vadd.f32 %v2363, %v2375
      %v2387 = vadd.f32 %v2364, %v2375
      %v2388 = vadd.f32 %v2365, %v2375
      %v2389 = vadd.f32 %v2366, %v2375
      %v2390 = vadd.f32 %v2367, %v2375
      %v2391 = vadd.f32 %v2368, %v2375
      %v2392 = vadd.f32 %v2369, %v2375
      %v2393 = vmin.f32 %v2377, 20.0
      %v2394 = vmin.f32 %v2378, 20.0
      %v2395 = vmin.f32 %v2379, 20.0
      %v2396 = vmin.f32 %v2380, 20.0
      %v2397 = vmin.f32 %v2381, 20.0
      %v2398 = vmin.f32 %v2382, 20.0
      %v2399 = vmin.f32 %v2383, 20.0
      %v2400 = vmin.f32 %v2384, 20.0
      %v2401 = vmin.f32 %v2385, 20.0
      %v2402 = vmin.f32 %v2386, 20.0
      %v2403 = vmin.f32 %v2387, 20.0
      %v2404 = vmin.f32 %v2388, 20.0
      %v2405 = vmin.f32 %v2389, 20.0
      %v2406 = vmin.f32 %v2390, 20.0
      %v2407 = vmin.f32 %v2391, 20.0
      %v2408 = vmin.f32 %v2392, 20.0
      %v2409 = vmul.f32 %v2393, 1.442695
      %v2410 = vpow.pop %v2409
      %v2411 = vmul.f32 %v2394, 1.442695
      %v2412 = vpow.pop %v2411
      %v2413 = vmul.f32 %v2395, 1.442695
      %v2414 = vpow.pop %v2413
      %v2415 = vmul.f32 %v2396, 1.442695
      %v2416 = vpow.pop %v2415
      %v2417 = vmul.f32 %v2397, 1.442695
      %v2418 = vpow.pop %v2417
      %v2419 = vmul.f32 %v2398, 1.442695
      %v2420 = vpow.pop %v2419
      %v2421 = vmul.f32 %v2399, 1.442695
      %v2422 = vpow.pop %v2421
      %v2423 = vmul.f32 %v2400, 1.442695
      %v2424 = vpow.pop %v2423
      %v2425 = vmul.f32 %v2401, 1.442695
      %v2426 = vpow.pop %v2425
      %v2427 = vmul.f32 %v2402, 1.442695
      %v2428 = vpow.pop %v2427
      %v2429 = vmul.f32 %v2403, 1.442695
      %v2430 = vpow.pop %v2429
      %v2431 = vmul.f32 %v2404, 1.442695
      %v2432 = vpow.pop %v2431
      %v2433 = vmul.f32 %v2405, 1.442695
      %v2434 = vpow.pop %v2433
      %v2435 = vmul.f32 %v2406, 1.442695
      %v2436 = vpow.pop %v2435
      %v2437 = vmul.f32 %v2407, 1.442695
      %v2438 = vpow.pop %v2437
      %v2439 = vmul.f32 %v2408, 1.442695
      %v2440 = vpow.pop %v2439
      %v2441 = vadd.f32 %v2410, 1.0
      %v2442 = vadd.f32 %v2412, 1.0
      %v2443 = vadd.f32 %v2414, 1.0
      %v2444 = vadd.f32 %v2416, 1.0
      %v2445 = vadd.f32 %v2418, 1.0
      %v2446 = vadd.f32 %v2420, 1.0
      %v2447 = vadd.f32 %v2422, 1.0
      %v2448 = vadd.f32 %v2424, 1.0
      %v2449 = vadd.f32 %v2426, 1.0
      %v2450 = vadd.f32 %v2428, 1.0
      %v2451 = vadd.f32 %v2430, 1.0
      %v2452 = vadd.f32 %v2432, 1.0
      %v2453 = vadd.f32 %v2434, 1.0
      %v2454 = vadd.f32 %v2436, 1.0
      %v2455 = vadd.f32 %v2438, 1.0
      %v2456 = vadd.f32 %v2440, 1.0
      %v2457 = vmul.f32 %v2441, %v2441
      %v2458 = vmul.f32 %v2442, %v2442
      %v2459 = vmul.f32 %v2443, %v2443
      %v2460 = vmul.f32 %v2444, %v2444
      %v2461 = vmul.f32 %v2445, %v2445
      %v2462 = vmul.f32 %v2446, %v2446
      %v2463 = vmul.f32 %v2447, %v2447
      %v2464 = vmul.f32 %v2448, %v2448
      %v2465 = vmul.f32 %v2449, %v2449
      %v2466 = vmul.f32 %v2450, %v2450
      %v2467 = vmul.f32 %v2451, %v2451
      %v2468 = vmul.f32 %v2452, %v2452
      %v2469 = vmul.f32 %v2453, %v2453
      %v2470 = vmul.f32 %v2454, %v2454
      %v2471 = vmul.f32 %v2455, %v2455
      %v2472 = vmul.f32 %v2456, %v2456
      %v2473 = vsub.f32 %v2457, 1.0
      %v2474 = vsub.f32 %v2458, 1.0
      %v2475 = vsub.f32 %v2459, 1.0
      %v2476 = vsub.f32 %v2460, 1.0
      %v2477 = vsub.f32 %v2461, 1.0
      %v2478 = vsub.f32 %v2462, 1.0
      %v2479 = vsub.f32 %v2463, 1.0
      %v2480 = vsub.f32 %v2464, 1.0
      %v2481 = vsub.f32 %v2465, 1.0
      %v2482 = vsub.f32 %v2466, 1.0
      %v2483 = vsub.f32 %v2467, 1.0
      %v2484 = vsub.f32 %v2468, 1.0
      %v2485 = vsub.f32 %v2469, 1.0
      %v2486 = vsub.f32 %v2470, 1.0
      %v2487 = vsub.f32 %v2471, 1.0
      %v2488 = vsub.f32 %v2472, 1.0
      %v2489 = vmul.f32 %v2377, %v2473
      %v2490 = vmul.f32 %v2378, %v2474
      %v2491 = vmul.f32 %v2379, %v2475
      %v2492 = vmul.f32 %v2380, %v2476
      %v2493 = vmul.f32 %v2381, %v2477
      %v2494 = vmul.f32 %v2382, %v2478
      %v2495 = vmul.f32 %v2383, %v2479
      %v2496 = vmul.f32 %v2384, %v2480
      %v2497 = vmul.f32 %v2385, %v2481
      %v2498 = vmul.f32 %v2386, %v2482
      %v2499 = vmul.f32 %v2387, %v2483
      %v2500 = vmul.f32 %v2388, %v2484
      %v2501 = vmul.f32 %v2389, %v2485
      %v2502 = vmul.f32 %v2390, %v2486
      %v2503 = vmul.f32 %v2391, %v2487
      %v2504 = vmul.f32 %v2392, %v2488
      %v2505 = vadd.f32 %v2457, 1.0
      %v2506 = vadd.f32 %v2458, 1.0
      %v2507 = vadd.f32 %v2459, 1.0
      %v2508 = vadd.f32 %v2460, 1.0
      %v2509 = vadd.f32 %v2461, 1.0
      %v2510 = vadd.f32 %v2462, 1.0
      %v2511 = vadd.f32 %v2463, 1.0
      %v2512 = vadd.f32 %v2464, 1.0
      %v2513 = vadd.f32 %v2465, 1.0
      %v2514 = vadd.f32 %v2466, 1.0
      %v2515 = vadd.f32 %v2467, 1.0
      %v2516 = vadd.f32 %v2468, 1.0
      %v2517 = vadd.f32 %v2469, 1.0
      %v2518 = vadd.f32 %v2470, 1.0
      %v2519 = vadd.f32 %v2471, 1.0
      %v2520 = vadd.f32 %v2472, 1.0
      %v2521 = vrcp.pop %v2505
      %v2522 = vmul.f32 %v2489, %v2521
      %v2523 = vrcp.pop %v2506
      %v2524 = vmul.f32 %v2490, %v2523
      %v2525 = vrcp.pop %v2507
      %v2526 = vmul.f32 %v2491, %v2525
      %v2527 = vrcp.pop %v2508
      %v2528 = vmul.f32 %v2492, %v2527
      %v2529 = vrcp.pop %v2509
      %v2530 = vmul.f32 %v2493, %v2529
      %v2531 = vrcp.pop %v2510
      %v2532 = vmul.f32 %v2494, %v2531
      %v2533 = vrcp.pop %v2511
      %v2534 = vmul.f32 %v2495, %v2533
      %v2535 = vrcp.pop %v2512
      %v2536 = vmul.f32 %v2496, %v2535
      %v2537 = vrcp.pop %v2513
      %v2538 = vmul.f32 %v2497, %v2537
      %v2539 = vrcp.pop %v2514
      %v2540 = vmul.f32 %v2498, %v2539
      %v2541 = vrcp.pop %v2515
      %v2542 = vmul.f32 %v2499, %v2541
      %v2543 = vrcp.pop %v2516
      %v2544 = vmul.f32 %v2500, %v2543
      %v2545 = vrcp.pop %v2517
      %v2546 = vmul.f32 %v2501, %v2545
      %v2547 = vrcp.pop %v2518
      %v2548 = vmul.f32 %v2502, %v2547
      %v2549 = vrcp.pop %v2519
      %v2550 = vmul.f32 %v2503, %v2549
      %v2551 = vrcp.pop %v2520
      %v2552 = vmul.f32 %v2504, %v2551
      %vm2553 = vcmp.gt.f32.partialorder %v2377, 20.0
      %vm2554 = vcmp.gt.f32.partialorder %v2378, 20.0
      %vm2555 = vcmp.gt.f32.partialorder %v2379, 20.0
      %vm2556 = vcmp.gt.f32.partialorder %v2380, 20.0
      %vm2557 = vcmp.gt.f32.partialorder %v2381, 20.0
      %vm2558 = vcmp.gt.f32.partialorder %v2382, 20.0
      %vm2559 = vcmp.gt.f32.partialorder %v2383, 20.0
      %vm2560 = vcmp.gt.f32.partialorder %v2384, 20.0
      %vm2561 = vcmp.gt.f32.partialorder %v2385, 20.0
      %vm2562 = vcmp.gt.f32.partialorder %v2386, 20.0
      %vm2563 = vcmp.gt.f32.partialorder %v2387, 20.0
      %vm2564 = vcmp.gt.f32.partialorder %v2388, 20.0
      %vm2565 = vcmp.gt.f32.partialorder %v2389, 20.0
      %vm2566 = vcmp.gt.f32.partialorder %v2390, 20.0
      %vm2567 = vcmp.gt.f32.partialorder %v2391, 20.0
      %vm2568 = vcmp.gt.f32.partialorder %v2392, 20.0
      %v2569 = vsel %vm2553, %v2377, %v2522
      %v2570 = vsel %vm2554, %v2378, %v2524
      %v2571 = vsel %vm2555, %v2379, %v2526
      %v2572 = vsel %vm2556, %v2380, %v2528
      %v2573 = vsel %vm2557, %v2381, %v2530
      %v2574 = vsel %vm2558, %v2382, %v2532
      %v2575 = vsel %vm2559, %v2383, %v2534
      %v2576 = vsel %vm2560, %v2384, %v2536
      %v2577 = vsel %vm2561, %v2385, %v2538
      %v2578 = vsel %vm2562, %v2386, %v2540
      %v2579 = vsel %vm2563, %v2387, %v2542
      %v2580 = vsel %vm2564, %v2388, %v2544
      %v2581 = vsel %vm2565, %v2389, %v2546
      %v2582 = vsel %vm2566, %v2390, %v2548
      %v2583 = vsel %vm2567, %v2391, %v2550
      %v2584 = vsel %vm2568, %v2392, %v2552
      %2585 = vst.msk [vmem:[%s295] sm:$0xff] %vm526, %v2569
      %2586 = vst.msk [vmem:[%s295 + $0x8] sm:$0xff] %vm526, %v2570
      %2587 = vst.msk [vmem:[%s295 + $0x10] sm:$0xff] %vm526, %v2571
      %2588 = vst.msk [vmem:[%s295 + $0x18] sm:$0xff] %vm526, %v2572
      %2589 = vst.msk [vmem:[%s295 + $0x20] sm:$0xff] %vm526, %v2573
      %2590 = vst.msk [vmem:[%s295 + $0x28] sm:$0xff] %vm526, %v2574
      %2591 = vst.msk [vmem:[%s295 + $0x30] sm:$0xff] %vm526, %v2575
      %2592 = vst.msk [vmem:[%s295 + $0x38] sm:$0xff] %vm526, %v2576
      %2593 = vst.msk [vmem:[%s295 + $0x40] sm:$0xff] %vm526, %v2577
      %2594 = vst.msk [vmem:[%s295 + $0x48] sm:$0xff] %vm526, %v2578
      %2595 = vst.msk [vmem:[%s295 + $0x50] sm:$0xff] %vm526, %v2579
      %2596 = vst.msk [vmem:[%s295 + $0x58] sm:$0xff] %vm526, %v2580
      %2597 = vst.msk [vmem:[%s295 + $0x60] sm:$0xff] %vm526, %v2581
      %2598 = vst.msk [vmem:[%s295 + $0x68] sm:$0xff] %vm526, %v2582
      %2599 = vst.msk [vmem:[%s295 + $0x70] sm:$0xff] %vm526, %v2583
      %2600 = vst.msk [vmem:[%s295 + $0x78] sm:$0xff] %vm526, %v2584
      %s2601 = smul.u32 8, %s21
      %p2602 = scmp.lt.s32.totalorder %s20, 1
      %s2603 = scalar_select %p2602, %s20, 1
      %p2604 = scmp.lt.s32.totalorder %s2601, 15
      %s2605 = scalar_select %p2604, %s2601, 15
      %p2606 = scmp.lt.s32.totalorder %s22, 0
      %s2607 = scalar_select %p2606, %s22, 0
      %s2608 = smul.addr %s2605, 2
      %s2609 = sadd.s32 %s2607, %s2608
      %s2610 = smul.addr %s2603, 32
      %s2611 = sadd.s32 %s2609, %s2610
      %s2612 = smul.addr %s2611, 8
      %s2613 = scalar_lea.vmem %s4, %s2612
      // Predicated region
      $region37: #{tpu_custom_call.1} parent=35 // pred_check
        %p2614 = pneg %p162
      $region38: #{tpu_custom_call.1} parent=35 // pred_check_branch
        %2616 = sbr.rel (%p2614) target = $region40
      $region39: #{tpu_custom_call.1} parent=35 // pred_region
        %s2617 = smul.u32 8, %s21
      $region40: #{tpu_custom_call.1} parent=35 // pred_fallthru
        _
    $region36: #{tpu_custom_call.1} parent=5 // pred_fallthru
      _
    %p2618 = scmp.le.s32.totalorder 2, %s10
    // Predicated region
    $region41: #{tpu_custom_call.1} parent=5 // pred_check
      %p2619 = pneg %p2618
    $region42: #{tpu_custom_call.1} parent=5 // pred_check_branch
      %2621 = sbr.rel (%p2619) target = $region44
    $region43: #{tpu_custom_call.1} parent=5 // pred_region
      %s2622 = ssub.s32 %s10, 2
      // Predicated region
      $region45: #{tpu_custom_call.1} parent=43 // pred_check
        %p2623 = pneg %p168
      $region46: #{tpu_custom_call.1} parent=43 // pred_check_branch
        %2625 = sbr.rel (%p2623) target = $region48
      $region47: #{tpu_custom_call.1} parent=43 // pred_region
        %s2626 = smul.u32 8, %s24
        %p2627 = scmp.lt.s32.totalorder %s23, 1
        %s2628 = scalar_select %p2627, %s23, 1
        %p2629 = scmp.lt.s32.totalorder %s2626, 15
        %s2630 = scalar_select %p2629, %s2626, 15
        %p2631 = scmp.lt.s32.totalorder %s25, 0
        %s2632 = scalar_select %p2631, %s25, 0
        %s2633 = smul.addr %s2630, 2
        %s2634 = sadd.s32 %s2632, %s2633
        %s2635 = smul.addr %s2628, 32
        %s2636 = sadd.s32 %s2634, %s2635
        %s2637 = smul.addr %s2636, 8
        %s2638 = scalar_lea.vmem %s4, %s2637
      $region48: #{tpu_custom_call.1} parent=43 // pred_fallthru
        _
    $region44: #{tpu_custom_call.1} parent=5 // pred_fallthru
      _
  $region6: #{tpu_custom_call.1} parent=0 // loop_footer
    %s14 = sadd.s32 1, %s10
  $region7: #{tpu_custom_call.1} parent=0 // loop_footer_branch
    %9 = sbr.rel target = $region3
  $region8: #{tpu_custom_call.1} parent=0 // loop_exit
    _

</llo_original>
